<compile_context>
chip_gen: v5e
topology: v5e:2x2
jax: 0.10.0
libtpu: 0.0.40
codegen_flags: <defaults>
</compile_context>

<pallas_src>
from functools import partial

import jax
import jax.numpy as jnp
from jax.experimental import pallas as pl
from jax.experimental.pallas import tpu as pltpu

IN_DIM = 256
OUT_DIM = 256
BN_EPS = 1e-5


def _round_up(a, b):
    return (a + b - 1) // b * b


def _per_row_vmem_bytes(V, C):
    """Rough per-row VMEM bytes: double-buffered I/O blocks + f32 temps."""
    return (2 * C * 2            # x bf16 input, double-buffered
            + 2 * 3 * 4          # xyz f32 input, double-buffered
            + 2 * V * C * 2      # feature output bf16, double-buffered
            + 2 * V * 3 * 4      # xyz output f32, double-buffered
            + 2 * C * 4          # h1 / h2 f32 temps
            + V * (C + 3) * 4)   # fused conv3 result (f32)


def _choose_tile_m(M, V, C, tile_m):
    # v7x megacore: make sure the "parallel" grid axis has >= 2 steps.
    if M >= 16:
        tile_m = min(tile_m, _round_up((M + 1) // 2, 8))
    # V-aware VMEM budget (headroom under v7x's 64 MiB physical VMEM).
    budget = 24 * 1024 * 1024
    max_rows = max(8, (budget // _per_row_vmem_bytes(V, C)) // 8 * 8)
    tile_m = min(tile_m, max_rows)
    return max(8, min(tile_m, _round_up(M, 8)))


def _vmem_limit_bytes(tile_m, V, C):
    weights = 2 * (C * C * 2) + C * V * (C + 3) * 2 + 16 * 1024
    need = tile_m * _per_row_vmem_bytes(V, C) + 2 * weights
    # 1.5x headroom, clamped into a range that is legal on every generation.
    return int(min(max(need * 3 // 2, 32 * 1024 * 1024), 56 * 1024 * 1024))


def _center_vote_kernel(x_ref, xyz_ref,
                        w1_ref, b1_ref, w2_ref, b2_ref, w3_ref, b3_ref,
                        vxyz_ref, vfeat_ref, *, vote_factor):
    """Per-tile fused MLP: conv1(BN,ReLU) -> conv2(BN,ReLU) -> fused conv3.

    bf16 MXU matmuls with f32 accumulation; bias / ReLU / residual adds in
    f32.  Fused head layout: columns [0, V*256) feature residuals, columns
    [V*256, V*256 + V*3) xyz offsets.  Feature outputs are stored as bf16.
    """
    x = x_ref[...]                                                   # (TM, 256) bf16
    h1 = jnp.dot(x, w1_ref[...],
                 preferred_element_type=jnp.float32) + b1_ref[...]
    h1 = jnp.maximum(h1, 0.0)
    h2 = jnp.dot(h1.astype(jnp.bfloat16), w2_ref[...],
                 preferred_element_type=jnp.float32) + b2_ref[...]
    h2 = jnp.maximum(h2, 0.0)
    net = jnp.dot(h2.astype(jnp.bfloat16), w3_ref[...],
                  preferred_element_type=jnp.float32) + b3_ref[...]  # (TM, V*(256+3))

    F = OUT_DIM
    V = vote_factor
    nfeat = V * F
    xf = x.astype(jnp.float32)
    for v in range(V):                       # 256-wide lane-aligned bf16 stores
        vfeat_ref[:, v * F:(v + 1) * F] = (
            xf + net[:, v * F:(v + 1) * F]).astype(jnp.bfloat16)
    # xyz epilogue: replicate the 3-wide root-joint block to V*3 lanes in-kernel
    xyz = xyz_ref[...]                                               # (TM, 3) f32
    vxyz_ref[...] = jnp.concatenate([xyz] * V, axis=1) + net[:, nfeat:]


def center_vote_forward(seed_xyz, seed_features, params, *,
                        origin_joint_id, vote_factor, tile_m=1024):
    B, N = seed_features.shape[:2]
    C = seed_features.shape[-1]
    V = vote_factor
    F = OUT_DIM
    M = B * N

    x = seed_features.reshape(M, C).astype(jnp.bfloat16)
    xyz_root = seed_xyz[:, :, origin_joint_id, :].reshape(M, 3).astype(jnp.float32)

    w1, b1, w2, b2, w3, b3 = params

    tile_m = _choose_tile_m(M, V, C, tile_m)
    grid = (pl.cdiv(M, tile_m),)            # ragged last block handled by Pallas

    def wspec(arr):  # weights / biases: same (full) block every grid step
        return pl.BlockSpec(arr.shape, lambda i: (0, 0))

    weight_bytes = sum(int(a.size) * a.dtype.itemsize for a in params)
    cost = pl.CostEstimate(
        flops=2 * M * C * (2 * C + V * (C + 3)),
        transcendentals=0,
        bytes_accessed=M * (C * 2 + 3 * 4 + V * F * 2 + V * 3 * 4) + weight_bytes,
    )

    out_xyz, out_feat = pl.pallas_call(
        partial(_center_vote_kernel, vote_factor=V),
        grid=grid,
        in_specs=[
            pl.BlockSpec((tile_m, C), lambda i: (i, 0)),
            pl.BlockSpec((tile_m, 3), lambda i: (i, 0)),
            wspec(w1), wspec(b1), wspec(w2), wspec(b2), wspec(w3), wspec(b3),
        ],
        out_specs=(
            pl.BlockSpec((tile_m, V * 3), lambda i: (i, 0)),
            pl.BlockSpec((tile_m, V * F), lambda i: (i, 0)),
        ),
        out_shape=(
            jax.ShapeDtypeStruct((M, V * 3), jnp.float32),
            jax.ShapeDtypeStruct((M, V * F), jnp.bfloat16),
        ),
        compiler_params=pltpu.CompilerParams(
            dimension_semantics=("parallel",),
            vmem_limit_bytes=_vmem_limit_bytes(tile_m, V, C),
        ),
        cost_estimate=cost,
    )(x, xyz_root, w1, b1, w2, b2, w3, b3)

    vote_xyz = out_xyz.reshape(B, N * V, 3)
    vote_features = out_feat.reshape(B, N * V, F)
    return vote_xyz, vote_features


# ---------------- deterministic parameter construction (glue) ----------------

def make_raw_params(key, vote_factor):
    """Raw conv / BN params matching the PyTorch module's shapes."""
    ks = jax.random.split(key, 14)
    out3 = (3 + OUT_DIM) * vote_factor

    def conv(kw, kb, out_c, in_c):
        w = 0.02 * jax.random.normal(kw, (out_c, in_c), jnp.float32)
        b = 0.02 * jax.random.normal(kb, (out_c,), jnp.float32)
        return w, b

    def bn(kg, kb, km, kv, c):
        gamma = 1.0 + 0.1 * jax.random.normal(kg, (c,), jnp.float32)
        beta = 0.1 * jax.random.normal(kb, (c,), jnp.float32)
        mean = 0.1 * jax.random.normal(km, (c,), jnp.float32)
        var = 1.0 + 0.1 * jnp.abs(jax.random.normal(kv, (c,), jnp.float32))
        return gamma, beta, mean, var

    w1, b1 = conv(ks[0], ks[1], 256, IN_DIM)
    bn1 = bn(ks[2], ks[3], ks[4], ks[5], 256)
    w2, b2 = conv(ks[6], ks[7], 256, 256)
    bn2 = bn(ks[8], ks[9], ks[10], ks[11], 256)
    w3, b3 = conv(ks[12], ks[13], out3, 256)
    return (w1, b1, bn1), (w2, b2, bn2), (w3, b3)


def fold_params(raw, vote_factor):
    """Fold eval-mode BatchNorm into the 1x1 convs; transpose to (in, out);
    fuse the last conv's xyz-offset and feature-residual heads into one
    lane-dense weight (features first, then xyz).  Weights bf16, biases f32."""
    (w1, b1, bn1), (w2, b2, bn2), (w3, b3) = raw

    def fold(w, b, bn):
        gamma, beta, mean, var = bn
        s = gamma / jnp.sqrt(var + BN_EPS)
        wt = (w.T * s[None, :]).astype(jnp.bfloat16)        # (in, out)
        be = ((b - mean) * s + beta).reshape(1, -1).astype(jnp.float32)
        return wt, be

    w1t, b1e = fold(w1, b1, bn1)
    w2t, b2e = fold(w2, b2, bn2)

    V = vote_factor
    stride = 3 + OUT_DIM
    idx_feat = jnp.concatenate([jnp.arange(OUT_DIM) + 3 + v * stride for v in range(V)])
    idx_xyz = jnp.concatenate([jnp.arange(3) + v * stride for v in range(V)])
    w3_all = jnp.concatenate([w3[idx_feat], w3[idx_xyz]], axis=0).T.astype(jnp.bfloat16)  # (256, V*259)
    b3_all = jnp.concatenate([b3[idx_feat], b3[idx_xyz]]).reshape(1, -1).astype(jnp.float32)
    return (w1t, b1e, w2t, b2e, w3_all, b3_all)


# ---------------- pure-JAX references ----------------

def ref_forward(seed_xyz, seed_features, raw, origin_joint_id, vote_factor):
    """Exact eval-mode module math in f32 (explicit BN)."""
    (w1, b1, bn1), (w2, b2, bn2), (w3, b3) = raw
    B, N = seed_features.shape[:2]
    x = seed_features.astype(jnp.float32)

    def cbr(x, w, b, bn):
        y = jnp.einsum('bnc,oc->bno', x, w) + b
        g, be, m, v = bn
        y = (y - m) * (g / jnp.sqrt(v + BN_EPS)) + be
        return jnp.maximum(y, 0.0)

    h1 = cbr(x, w1, b1, bn1)
    h2 = cbr(h1, w2, b2, bn2)
    net = jnp.einsum('bnc,oc->bno', h2, w3) + b3
    net = net.reshape(B, N, vote_factor, 3 + OUT_DIM)
    xyz_root = seed_xyz[:, :, origin_joint_id, :]
    vote_xyz = (xyz_root[:, :, None, :] + net[..., :3]).reshape(B, N * vote_factor, 3)
    vote_feat = (x[:, :, None, :] + net[..., 3:]).reshape(B, N * vote_factor, OUT_DIM)
    return vote_xyz, vote_feat


def ref_forward_mixed(seed_xyz, seed_features, folded, origin_joint_id, vote_factor):
    """Mirror of the kernel's mixed precision (bf16 streamed input, bf16 MXU
    matmuls with f32 accumulation, f32 elementwise, bf16 feature output)."""
    w1, b1, w2, b2, w3, b3 = folded
    B, N = seed_features.shape[:2]
    M = B * N
    F = OUT_DIM
    V = vote_factor
    x = seed_features.reshape(M, -1).astype(jnp.bfloat16)
    xyz = seed_xyz[:, :, origin_joint_id, :].reshape(M, 3).astype(jnp.float32)

    h1 = jnp.maximum(jnp.dot(x, w1, preferred_element_type=jnp.float32) + b1, 0.0)
    h2 = jnp.maximum(jnp.dot(h1.astype(jnp.bfloat16), w2,
                             preferred_element_type=jnp.float32) + b2, 0.0)
    net = jnp.dot(h2.astype(jnp.bfloat16), w3,
                  preferred_element_type=jnp.float32) + b3
    xf = x.astype(jnp.float32)
    feat = (net[:, :V * F].reshape(M, V, F) + xf[:, None, :]).astype(jnp.bfloat16)
    off = net[:, V * F:].reshape(M, V, 3)
    vxyz = xyz[:, None, :] + off
    return vxyz.reshape(B, N * V, 3), feat.reshape(B, N * V, F)


if __name__ == "__main__":
    key = jax.random.PRNGKey(0)
    k_xyz, k_feat, k_par = jax.random.split(key, 3)

    B, N, J = 2, 64, 4          # batch, num_seed, num_joints
    vote_factor = 2
    origin_joint_id = 0

    seed_xyz = jax.random.normal(k_xyz, (B, N, J, 3), jnp.float32)
    seed_features = jax.random.normal(k_feat, (B, N, IN_DIM), jnp.float32)

    raw = make_raw_params(k_par, vote_factor)
    params = fold_params(raw, vote_factor)

    vote_xyz, vote_features = center_vote_forward(
        seed_xyz, seed_features, params,
        origin_joint_id=origin_joint_id, vote_factor=vote_factor)
    jax.block_until_ready((vote_xyz, vote_features))

    assert vote_xyz.shape == (B, N * vote_factor, 3)
    assert vote_features.shape == (B, N * vote_factor, OUT_DIM)
    assert vote_features.dtype == jnp.bfloat16

    # tight check vs. a reference that mirrors the kernel's bf16/f32 mix
    mx_xyz, mx_feat = ref_forward_mixed(seed_xyz, seed_features, params,
                                        origin_joint_id, vote_factor)
    assert jnp.allclose(vote_xyz, mx_xyz, atol=2e-3, rtol=2e-3)
    assert jnp.allclose(vote_features.astype(jnp.float32),
                        mx_feat.astype(jnp.float32), atol=2e-3, rtol=2e-3)

    # loose check vs. exact f32 eval-mode module math (bf16 quantization noise)
    ref_xyz, ref_feat = ref_forward(seed_xyz, seed_features, raw,
                                    origin_joint_id, vote_factor)
    assert jnp.allclose(vote_xyz, ref_xyz, atol=2e-2, rtol=2e-2)
    assert jnp.allclose(vote_features.astype(jnp.float32), ref_feat,
                        atol=5e-2, rtol=3e-2)

    print("KERNEL_OK")
</pallas_src>

<mosaic_0001>
module attributes {stable_mosaic.version = 11 : i64} {
  func.func @_center_vote_kernel(%arg0: i32, %arg1: memref<64x256xbf16, #tpu.memory_space<vmem>>, %arg2: memref<64x3xf32, #tpu.memory_space<vmem>>, %arg3: memref<256x256xbf16, #tpu.memory_space<vmem>>, %arg4: memref<1x256xf32, #tpu.memory_space<vmem>>, %arg5: memref<256x256xbf16, #tpu.memory_space<vmem>>, %arg6: memref<1x256xf32, #tpu.memory_space<vmem>>, %arg7: memref<256x518xbf16, #tpu.memory_space<vmem>>, %arg8: memref<1x518xf32, #tpu.memory_space<vmem>>, %arg9: memref<64x6xf32, #tpu.memory_space<vmem>>, %arg10: memref<64x512xbf16, #tpu.memory_space<vmem>>) attributes {dimension_semantics = [#tpu.dimension_semantics<parallel>], iteration_bounds = array<i64: 2>, scalar_prefetch = 0 : i64, scratch_operands = 0 : i64, tpu.core_type = #tpu.core_type<tc>, window_params = [{transform_indices = @transform_0, window_bounds = array<i64: 64, 256>}, {transform_indices = @transform_1, window_bounds = array<i64: 64, 3>}, {pipeline_mode = #tpu.pipeline_mode<synchronous>, transform_indices = @transform_2, window_bounds = array<i64: 256, 256>}, {pipeline_mode = #tpu.pipeline_mode<synchronous>, transform_indices = @transform_3, window_bounds = array<i64: 1, 256>}, {pipeline_mode = #tpu.pipeline_mode<synchronous>, transform_indices = @transform_4, window_bounds = array<i64: 256, 256>}, {pipeline_mode = #tpu.pipeline_mode<synchronous>, transform_indices = @transform_5, window_bounds = array<i64: 1, 256>}, {pipeline_mode = #tpu.pipeline_mode<synchronous>, transform_indices = @transform_6, window_bounds = array<i64: 256, 518>}, {pipeline_mode = #tpu.pipeline_mode<synchronous>, transform_indices = @transform_7, window_bounds = array<i64: 1, 518>}, {transform_indices = @transform_8, window_bounds = array<i64: 64, 6>}, {transform_indices = @transform_9, window_bounds = array<i64: 64, 512>}]} {
    %c0 = arith.constant 0 : index
    %c0_0 = arith.constant 0 : index
    %0 = vector.load %arg1[%c0, %c0_0] : memref<64x256xbf16, #tpu.memory_space<vmem>>, vector<64x256xbf16>
    %c0_1 = arith.constant 0 : index
    %c0_2 = arith.constant 0 : index
    %1 = vector.load %arg3[%c0_1, %c0_2] : memref<256x256xbf16, #tpu.memory_space<vmem>>, vector<256x256xbf16>
    %cst = arith.constant dense<0.000000e+00> : vector<64x256xf32>
    %2 = tpu.matmul %0, %1, %cst {dimension_numbers = #tpu.dot_dimension_numbers<[1], [0], [0], [1], [0, 0, 1, 1], [], []>} : vector<64x256xbf16>, vector<256x256xbf16>, vector<64x256xf32> -> vector<64x256xf32>
    %c0_3 = arith.constant 0 : index
    %c0_4 = arith.constant 0 : index
    %3 = vector.load %arg4[%c0_3, %c0_4] : memref<1x256xf32, #tpu.memory_space<vmem>>, vector<1x256xf32>
    %4 = vector.broadcast %3 : vector<1x256xf32> to vector<64x256xf32>
    %5 = arith.addf %2, %4 : vector<64x256xf32>
    %cst_5 = arith.constant 0.000000e+00 : f32
    %6 = vector.broadcast %cst_5 : f32 to vector<64x256xf32>
    %7 = arith.maximumf %5, %6 : vector<64x256xf32>
    %8 = arith.truncf %7 : vector<64x256xf32> to vector<64x256xbf16>
    %c0_6 = arith.constant 0 : index
    %c0_7 = arith.constant 0 : index
    %9 = vector.load %arg5[%c0_6, %c0_7] : memref<256x256xbf16, #tpu.memory_space<vmem>>, vector<256x256xbf16>
    %cst_8 = arith.constant dense<0.000000e+00> : vector<64x256xf32>
    %10 = tpu.matmul %8, %9, %cst_8 {dimension_numbers = #tpu.dot_dimension_numbers<[1], [0], [0], [1], [0, 0, 1, 1], [], []>} : vector<64x256xbf16>, vector<256x256xbf16>, vector<64x256xf32> -> vector<64x256xf32>
    %c0_9 = arith.constant 0 : index
    %c0_10 = arith.constant 0 : index
    %11 = vector.load %arg6[%c0_9, %c0_10] : memref<1x256xf32, #tpu.memory_space<vmem>>, vector<1x256xf32>
    %12 = vector.broadcast %11 : vector<1x256xf32> to vector<64x256xf32>
    %13 = arith.addf %10, %12 : vector<64x256xf32>
    %cst_11 = arith.constant 0.000000e+00 : f32
    %14 = vector.broadcast %cst_11 : f32 to vector<64x256xf32>
    %15 = arith.maximumf %13, %14 : vector<64x256xf32>
    %16 = arith.truncf %15 : vector<64x256xf32> to vector<64x256xbf16>
    %c0_12 = arith.constant 0 : index
    %c0_13 = arith.constant 0 : index
    %17 = vector.load %arg7[%c0_12, %c0_13] : memref<256x518xbf16, #tpu.memory_space<vmem>>, vector<256x518xbf16>
    %cst_14 = arith.constant dense<0.000000e+00> : vector<64x518xf32>
    %18 = tpu.matmul %16, %17, %cst_14 {dimension_numbers = #tpu.dot_dimension_numbers<[1], [0], [0], [1], [0, 0, 1, 1], [], []>} : vector<64x256xbf16>, vector<256x518xbf16>, vector<64x518xf32> -> vector<64x518xf32>
    %c0_15 = arith.constant 0 : index
    %c0_16 = arith.constant 0 : index
    %19 = vector.load %arg8[%c0_15, %c0_16] : memref<1x518xf32, #tpu.memory_space<vmem>>, vector<1x518xf32>
    %20 = vector.broadcast %19 : vector<1x518xf32> to vector<64x518xf32>
    %21 = arith.addf %18, %20 : vector<64x518xf32>
    %22 = arith.extf %0 : vector<64x256xbf16> to vector<64x256xf32>
    %23 = vector.extract_strided_slice %21 {offsets = [0, 0], sizes = [64, 256], strides = [1, 1]} : vector<64x518xf32> to vector<64x256xf32>
    %24 = arith.addf %22, %23 : vector<64x256xf32>
    %25 = arith.truncf %24 : vector<64x256xf32> to vector<64x256xbf16>
    %c0_17 = arith.constant 0 : index
    %c0_18 = arith.constant 0 : index
    %26 = vector.load %arg10[%c0_17, %c0_18] : memref<64x512xbf16, #tpu.memory_space<vmem>>, vector<64x256xbf16>
    tpu.vector_store %arg10[%c0_17, %c0_18], %25 {strides = array<i32>} : memref<64x512xbf16, #tpu.memory_space<vmem>>, vector<64x256xbf16>,
    %27 = vector.extract_strided_slice %21 {offsets = [0, 256], sizes = [64, 256], strides = [1, 1]} : vector<64x518xf32> to vector<64x256xf32>
    %28 = arith.addf %22, %27 : vector<64x256xf32>
    %29 = arith.truncf %28 : vector<64x256xf32> to vector<64x256xbf16>
    %c0_19 = arith.constant 0 : index
    %c256 = arith.constant 256 : index
    %30 = vector.load %arg10[%c0_19, %c256] : memref<64x512xbf16, #tpu.memory_space<vmem>>, vector<64x256xbf16>
    tpu.vector_store %arg10[%c0_19, %c256], %29 {strides = array<i32>} : memref<64x512xbf16, #tpu.memory_space<vmem>>, vector<64x256xbf16>,
    %c0_20 = arith.constant 0 : index
    %c0_21 = arith.constant 0 : index
    %31 = vector.load %arg2[%c0_20, %c0_21] : memref<64x3xf32, #tpu.memory_space<vmem>>, vector<64x3xf32>
    %32 = tpu.concatenate %31, %31 in 1 : vector<64x3xf32>, vector<64x3xf32> -> vector<64x6xf32>
    %33 = vector.extract_strided_slice %21 {offsets = [0, 512], sizes = [64, 6], strides = [1, 1]} : vector<64x518xf32> to vector<64x6xf32>
    %34 = arith.addf %32, %33 : vector<64x6xf32>
    %c0_22 = arith.constant 0 : index
    %c0_23 = arith.constant 0 : index
    %35 = vector.load %arg9[%c0_22, %c0_23] : memref<64x6xf32, #tpu.memory_space<vmem>>, vector<64x6xf32>
    tpu.vector_store %arg9[%c0_22, %c0_23], %34 {strides = array<i32>} : memref<64x6xf32, #tpu.memory_space<vmem>>, vector<64x6xf32>,
    return
  }
  func.func @transform_0(%arg0: i32) -> (i32, i32) {
    %c0_i32 = arith.constant 0 : i32
    %c0_i32_0 = arith.constant 0 : i32
    return %arg0, %c0_i32 : i32, i32
  }
  func.func @transform_1(%arg0: i32) -> (i32, i32) {
    %c0_i32 = arith.constant 0 : i32
    %c0_i32_0 = arith.constant 0 : i32
    return %arg0, %c0_i32 : i32, i32
  }
  func.func @transform_2(%arg0: i32) -> (i32, i32) {
    %c0_i32 = arith.constant 0 : i32
    %c0_i32_0 = arith.constant 0 : i32
    %c0_i32_1 = arith.constant 0 : i32
    return %c0_i32, %c0_i32_0 : i32, i32
  }
  func.func @transform_3(%arg0: i32) -> (i32, i32) {
    %c0_i32 = arith.constant 0 : i32
    %c0_i32_0 = arith.constant 0 : i32
    %c0_i32_1 = arith.constant 0 : i32
    return %c0_i32, %c0_i32_0 : i32, i32
  }
  func.func @transform_4(%arg0: i32) -> (i32, i32) {
    %c0_i32 = arith.constant 0 : i32
    %c0_i32_0 = arith.constant 0 : i32
    %c0_i32_1 = arith.constant 0 : i32
    return %c0_i32, %c0_i32_0 : i32, i32
  }
  func.func @transform_5(%arg0: i32) -> (i32, i32) {
    %c0_i32 = arith.constant 0 : i32
    %c0_i32_0 = arith.constant 0 : i32
    %c0_i32_1 = arith.constant 0 : i32
    return %c0_i32, %c0_i32_0 : i32, i32
  }
  func.func @transform_6(%arg0: i32) -> (i32, i32) {
    %c0_i32 = arith.constant 0 : i32
    %c0_i32_0 = arith.constant 0 : i32
    %c0_i32_1 = arith.constant 0 : i32
    return %c0_i32, %c0_i32_0 : i32, i32
  }
  func.func @transform_7(%arg0: i32) -> (i32, i32) {
    %c0_i32 = arith.constant 0 : i32
    %c0_i32_0 = arith.constant 0 : i32
    %c0_i32_1 = arith.constant 0 : i32
    return %c0_i32, %c0_i32_0 : i32, i32
  }
  func.func @transform_8(%arg0: i32) -> (i32, i32) {
    %c0_i32 = arith.constant 0 : i32
    %c0_i32_0 = arith.constant 0 : i32
    return %arg0, %c0_i32 : i32, i32
  }
  func.func @transform_9(%arg0: i32) -> (i32, i32) {
    %c0_i32 = arith.constant 0 : i32
    %c0_i32_0 = arith.constant 0 : i32
    return %arg0, %c0_i32 : i32, i32
  }
}

</mosaic_0001>

<llo_original>
// kernel: tpu_custom_call.1
$region0: #{tpu_custom_call.1}
  #allocation0 [shape = 'u32[]', space=smem, size = 0x4, offset = 0x4, fixed_abs, tag = 'smem constant byte address 0x4 - core index']
  #allocation1 [shape = 'u32[72,128]{1,0:T(1,128)}', space=vmem, size = 0x9000, scoped, tag = 'internal scratch']
  %s0 = inlined_call_operand.vmem [shape: bf16[128,256], index: 0, kind: input, shape index: {}]
  %s1 = inlined_call_operand.vmem [shape: f32[128,3], index: 1, kind: input, shape index: {}]
  %s2 = inlined_call_operand.vmem [shape: bf16[256,256], index: 2, kind: input, shape index: {}]
  %s3 = inlined_call_operand.vmem [shape: f32[1,256], index: 3, kind: input, shape index: {}]
  %s4 = inlined_call_operand.vmem [shape: bf16[256,256], index: 4, kind: input, shape index: {}]
  %s5 = inlined_call_operand.vmem [shape: f32[1,256], index: 5, kind: input, shape index: {}]
  %s6 = inlined_call_operand.vmem [shape: bf16[256,518], index: 6, kind: input, shape index: {}]
  %s7 = inlined_call_operand.vmem [shape: f32[1,518], index: 7, kind: input, shape index: {}]
  %s8 = inlined_call_operand.vmem [shape: f32[128,6], index: 8, kind: output, shape index: {0}]
  %s9 = inlined_call_operand.hbm [shape: bf16[128,512], index: 9, kind: output, shape index: {1}]
  %10 = xla_tuple %s8, %s9
  %s11 = sld [smem:[#allocation0]]
  $region73: #{tpu_custom_call.1} parent=0
    _
  %s13 = ssub.s32 1, %s11
  %s14 = scalar_select 0, %s13, %s11
  $region1: #{tpu_custom_call.1} parent=0
    #allocation2 [shape = 'u8[131072]{0}', space=vmem, size = 0x20000, scoped, tag = 'output window, operand 1']
    #allocation3 [shape = 's32[2]{0}', space=sflag, size = 0x8, scoped, tag = 'scoped memory for tpu_custom_call.1']
    %15 = vsyncpa [#allocation3], 0
    %s16 = scalar_lea.sflag [#allocation3], 1
    %17 = vsyncpa %s16, 0
    loop: start=0, step=1, limit=4
    $region2: #{tpu_custom_call.1} parent=1 // loop_pre_header
      _
    $region3: #{tpu_custom_call.1} parent=1 // loop_header
      %s19 = sphi 0, %s23
      %p20 = scmp.ge.s32.totalorder %s19, 4
      %s29 = sphi 0, %s31
      %s32 = sphi 0, %s29
      %s33 = sphi 0, %s32
      %s49 = sphi 0, %s33
      %s55 = sphi 0, %s57
      %s58 = sphi 0, %s55
      %s59 = sphi 0, %s58
      %s75 = sphi 0, %s59
      %s79 = sphi 0, %s79
      %s81 = sphi 0, %s79
      %s82 = sphi 0, %s81
      %s96 = sphi 0, %s82
      %s100 = sphi 0, %s100
      %s102 = sphi 0, %s100
      %s103 = sphi 0, %s102
      %s117 = sphi 0, %s103
      %s121 = sphi 0, %s121
      %s123 = sphi 0, %s121
      %s124 = sphi 0, %s123
      %s138 = sphi 0, %s124
      %s142 = sphi 0, %s142
      %s144 = sphi 0, %s142
      %s145 = sphi 0, %s144
      %s159 = sphi 0, %s145
      %s163 = sphi 0, %s163
      %s165 = sphi 0, %s163
      %s166 = sphi 0, %s165
      %s180 = sphi 0, %s166
      %s184 = sphi 0, %s184
      %s186 = sphi 0, %s184
      %s187 = sphi 0, %s186
      %s201 = sphi 0, %s187
      %s207 = sphi 0, %s209
      %s210 = sphi 0, %s207
      %s211 = sphi 0, %s210
      %s227 = sphi 0, %s211
      %s233 = sphi 0, %s235
      %s236 = sphi 0, %s233
      %s237 = sphi 0, %s236
      %s253 = sphi 0, %s237
    $region4: #{tpu_custom_call.1} parent=1 // loop_header_branch
      %22 = sbr.rel (%p20) target = $region8
    $region5: #{tpu_custom_call.1} parent=1 // loop_body
      %s24 = ssub.s32 %s19, 1
      %s25 = ssub.s32 %s19, 2
      %s26 = sadd.s32 %s19, 1
      %s27 = ssub.s32 %s19, %s26
      %p28 = scmp.eq.s32.totalorder %s27, 0
      %s30 = sadd.s32 %s29, 1
      %s31 = scalar_select %p28, %s29, %s30
      %p34 = pneg %p28
      %p35 = scmp.eq.s32.totalorder %s19, 1
      %p36 = por %p34, %p35
      %p37 = scmp.ne.s32.totalorder %s29, %s32
      %p38 = scmp.eq.s32.totalorder %s19, 0
      %p39 = por %p37, %p38
      %p40 = scmp.ne.s32.totalorder %s29, %s32
      %p41 = scmp.eq.s32.totalorder %s24, 1
      %p42 = por %p40, %p41
      %p43 = scmp.ne.s32.totalorder %s32, %s33
      %p44 = scmp.eq.s32.totalorder %s24, 0
      %p45 = por %p43, %p44
      %p46 = scmp.ne.s32.totalorder %s32, %s33
      %p47 = scmp.eq.s32.totalorder %s25, 1
      %p48 = por %p46, %p47
      %p50 = scmp.ne.s32.totalorder %s33, %s49
      %p51 = scmp.eq.s32.totalorder %s25, 0
      %p52 = por %p50, %p51
      %s53 = ssub.s32 %s19, %s26
      %p54 = scmp.eq.s32.totalorder %s53, 0
      %s56 = sadd.s32 %s55, 1
      %s57 = scalar_select %p54, %s55, %s56
      %p60 = pneg %p54
      %p61 = scmp.eq.s32.totalorder %s19, 1
      %p62 = por %p60, %p61
      %p63 = scmp.ne.s32.totalorder %s55, %s58
      %p64 = scmp.eq.s32.totalorder %s19, 0
      %p65 = por %p63, %p64
      %p66 = scmp.ne.s32.totalorder %s55, %s58
      %p67 = scmp.eq.s32.totalorder %s24, 1
      %p68 = por %p66, %p67
      %p69 = scmp.ne.s32.totalorder %s58, %s59
      %p70 = scmp.eq.s32.totalorder %s24, 0
      %p71 = por %p69, %p70
      %p72 = scmp.ne.s32.totalorder %s58, %s59
      %p73 = scmp.eq.s32.totalorder %s25, 1
      %p74 = por %p72, %p73
      %p76 = scmp.ne.s32.totalorder %s59, %s75
      %p77 = scmp.eq.s32.totalorder %s25, 0
      %p78 = por %p76, %p77
      %s80 = sadd.s32 %s79, 1
      %p83 = scmp.eq.s32.totalorder %s19, 1
      %p84 = scmp.ne.s32.totalorder %s79, %s81
      %p85 = scmp.eq.s32.totalorder %s19, 0
      %p86 = por %p84, %p85
      %p87 = scmp.ne.s32.totalorder %s79, %s81
      %p88 = scmp.eq.s32.totalorder %s24, 1
      %p89 = por %p87, %p88
      %p90 = scmp.ne.s32.totalorder %s81, %s82
      %p91 = scmp.eq.s32.totalorder %s24, 0
      %p92 = por %p90, %p91
      %p93 = scmp.ne.s32.totalorder %s81, %s82
      %p94 = scmp.eq.s32.totalorder %s25, 1
      %p95 = por %p93, %p94
      %p97 = scmp.ne.s32.totalorder %s82, %s96
      %p98 = scmp.eq.s32.totalorder %s25, 0
      %p99 = por %p97, %p98
      %s101 = sadd.s32 %s100, 1
      %p104 = scmp.eq.s32.totalorder %s19, 1
      %p105 = scmp.ne.s32.totalorder %s100, %s102
      %p106 = scmp.eq.s32.totalorder %s19, 0
      %p107 = por %p105, %p106
      %p108 = scmp.ne.s32.totalorder %s100, %s102
      %p109 = scmp.eq.s32.totalorder %s24, 1
      %p110 = por %p108, %p109
      %p111 = scmp.ne.s32.totalorder %s102, %s103
      %p112 = scmp.eq.s32.totalorder %s24, 0
      %p113 = por %p111, %p112
      %p114 = scmp.ne.s32.totalorder %s102, %s103
      %p115 = scmp.eq.s32.totalorder %s25, 1
      %p116 = por %p114, %p115
      %p118 = scmp.ne.s32.totalorder %s103, %s117
      %p119 = scmp.eq.s32.totalorder %s25, 0
      %p120 = por %p118, %p119
      %s122 = sadd.s32 %s121, 1
      %p125 = scmp.eq.s32.totalorder %s19, 1
      %p126 = scmp.ne.s32.totalorder %s121, %s123
      %p127 = scmp.eq.s32.totalorder %s19, 0
      %p128 = por %p126, %p127
      %p129 = scmp.ne.s32.totalorder %s121, %s123
      %p130 = scmp.eq.s32.totalorder %s24, 1
      %p131 = por %p129, %p130
      %p132 = scmp.ne.s32.totalorder %s123, %s124
      %p133 = scmp.eq.s32.totalorder %s24, 0
      %p134 = por %p132, %p133
      %p135 = scmp.ne.s32.totalorder %s123, %s124
      %p136 = scmp.eq.s32.totalorder %s25, 1
      %p137 = por %p135, %p136
      %p139 = scmp.ne.s32.totalorder %s124, %s138
      %p140 = scmp.eq.s32.totalorder %s25, 0
      %p141 = por %p139, %p140
      %s143 = sadd.s32 %s142, 1
      %p146 = scmp.eq.s32.totalorder %s19, 1
      %p147 = scmp.ne.s32.totalorder %s142, %s144
      %p148 = scmp.eq.s32.totalorder %s19, 0
      %p149 = por %p147, %p148
      %p150 = scmp.ne.s32.totalorder %s142, %s144
      %p151 = scmp.eq.s32.totalorder %s24, 1
      %p152 = por %p150, %p151
      %p153 = scmp.ne.s32.totalorder %s144, %s145
      %p154 = scmp.eq.s32.totalorder %s24, 0
      %p155 = por %p153, %p154
      %p156 = scmp.ne.s32.totalorder %s144, %s145
      %p157 = scmp.eq.s32.totalorder %s25, 1
      %p158 = por %p156, %p157
      %p160 = scmp.ne.s32.totalorder %s145, %s159
      %p161 = scmp.eq.s32.totalorder %s25, 0
      %p162 = por %p160, %p161
      %s164 = sadd.s32 %s163, 1
      %p167 = scmp.eq.s32.totalorder %s19, 1
      %p168 = scmp.ne.s32.totalorder %s163, %s165
      %p169 = scmp.eq.s32.totalorder %s19, 0
      %p170 = por %p168, %p169
      %p171 = scmp.ne.s32.totalorder %s163, %s165
      %p172 = scmp.eq.s32.totalorder %s24, 1
      %p173 = por %p171, %p172
      %p174 = scmp.ne.s32.totalorder %s165, %s166
      %p175 = scmp.eq.s32.totalorder %s24, 0
      %p176 = por %p174, %p175
      %p177 = scmp.ne.s32.totalorder %s165, %s166
      %p178 = scmp.eq.s32.totalorder %s25, 1
      %p179 = por %p177, %p178
      %p181 = scmp.ne.s32.totalorder %s166, %s180
      %p182 = scmp.eq.s32.totalorder %s25, 0
      %p183 = por %p181, %p182
      %s185 = sadd.s32 %s184, 1
      %p188 = scmp.eq.s32.totalorder %s19, 1
      %p189 = scmp.ne.s32.totalorder %s184, %s186
      %p190 = scmp.eq.s32.totalorder %s19, 0
      %p191 = por %p189, %p190
      %p192 = scmp.ne.s32.totalorder %s184, %s186
      %p193 = scmp.eq.s32.totalorder %s24, 1
      %p194 = por %p192, %p193
      %p195 = scmp.ne.s32.totalorder %s186, %s187
      %p196 = scmp.eq.s32.totalorder %s24, 0
      %p197 = por %p195, %p196
      %p198 = scmp.ne.s32.totalorder %s186, %s187
      %p199 = scmp.eq.s32.totalorder %s25, 1
      %p200 = por %p198, %p199
      %p202 = scmp.ne.s32.totalorder %s187, %s201
      %p203 = scmp.eq.s32.totalorder %s25, 0
      %p204 = por %p202, %p203
      %s205 = ssub.s32 %s19, %s26
      %p206 = scmp.eq.s32.totalorder %s205, 0
      %s208 = sadd.s32 %s207, 1
      %s209 = scalar_select %p206, %s207, %s208
      %p212 = pneg %p206
      %p213 = scmp.eq.s32.totalorder %s19, 1
      %p214 = por %p212, %p213
      %p215 = scmp.ne.s32.totalorder %s207, %s210
      %p216 = scmp.eq.s32.totalorder %s19, 0
      %p217 = por %p215, %p216
      %p218 = scmp.ne.s32.totalorder %s207, %s210
      %p219 = scmp.eq.s32.totalorder %s24, 1
      %p220 = por %p218, %p219
      %p221 = scmp.ne.s32.totalorder %s210, %s211
      %p222 = scmp.eq.s32.totalorder %s24, 0
      %p223 = por %p221, %p222
      %p224 = scmp.ne.s32.totalorder %s210, %s211
      %p225 = scmp.eq.s32.totalorder %s25, 1
      %p226 = por %p224, %p225
      %p228 = scmp.ne.s32.totalorder %s211, %s227
      %p229 = scmp.eq.s32.totalorder %s25, 0
      %p230 = por %p228, %p229
      %s231 = ssub.s32 %s19, %s26
      %p232 = scmp.eq.s32.totalorder %s231, 0
      %s234 = sadd.s32 %s233, 1
      %s235 = scalar_select %p232, %s233, %s234
      %p238 = pneg %p232
      %p239 = scmp.eq.s32.totalorder %s19, 1
      %p240 = por %p238, %p239
      %p241 = scmp.ne.s32.totalorder %s233, %s236
      %p242 = scmp.eq.s32.totalorder %s19, 0
      %p243 = por %p241, %p242
      %p244 = scmp.ne.s32.totalorder %s233, %s236
      %p245 = scmp.eq.s32.totalorder %s24, 1
      %p246 = por %p244, %p245
      %p247 = scmp.ne.s32.totalorder %s236, %s237
      %p248 = scmp.eq.s32.totalorder %s24, 0
      %p249 = por %p247, %p248
      %p250 = scmp.ne.s32.totalorder %s236, %s237
      %p251 = scmp.eq.s32.totalorder %s25, 1
      %p252 = por %p250, %p251
      %p254 = scmp.ne.s32.totalorder %s237, %s253
      %p255 = scmp.eq.s32.totalorder %s25, 0
      %p256 = por %p254, %p255
      %p257 = scmp.le.s32.totalorder 1, %s19
      %p258 = scmp.lt.s32.totalorder %s19, 3
      %p259 = pnand %p257, %p258
      %p260 = pneg %p259
      // Predicated region
      $region9: #{tpu_custom_call.1} parent=5 // pred_check
        _
      $region10: #{tpu_custom_call.1} parent=5 // pred_check_branch
        %262 = sbr.rel (%p259) target = $region12
      $region11: #{tpu_custom_call.1} parent=5 // pred_region
        %s263 = ssub.s32 %s19, 1
        // Predicated region
        $region13: #{tpu_custom_call.1} parent=11 // pred_check
          %p264 = pneg %p92
        $region14: #{tpu_custom_call.1} parent=11 // pred_check_branch
          %266 = sbr.rel (%p264) target = $region16
        $region15: #{tpu_custom_call.1} parent=11 // pred_region
          _
        $region16: #{tpu_custom_call.1} parent=11 // pred_fallthru
          _
        // Predicated region
        $region17: #{tpu_custom_call.1} parent=11 // pred_check
          %p267 = pneg %p113
        $region18: #{tpu_custom_call.1} parent=11 // pred_check_branch
          %269 = sbr.rel (%p267) target = $region20
        $region19: #{tpu_custom_call.1} parent=11 // pred_region
          _
        $region20: #{tpu_custom_call.1} parent=11 // pred_fallthru
          _
        // Predicated region
        $region21: #{tpu_custom_call.1} parent=11 // pred_check
          %p270 = pneg %p134
        $region22: #{tpu_custom_call.1} parent=11 // pred_check_branch
          %272 = sbr.rel (%p270) target = $region24
        $region23: #{tpu_custom_call.1} parent=11 // pred_region
          _
        $region24: #{tpu_custom_call.1} parent=11 // pred_fallthru
          _
        // Predicated region
        $region25: #{tpu_custom_call.1} parent=11 // pred_check
          %p273 = pneg %p155
        $region26: #{tpu_custom_call.1} parent=11 // pred_check_branch
          %275 = sbr.rel (%p273) target = $region28
        $region27: #{tpu_custom_call.1} parent=11 // pred_region
          _
        $region28: #{tpu_custom_call.1} parent=11 // pred_fallthru
          _
        // Predicated region
        $region29: #{tpu_custom_call.1} parent=11 // pred_check
          %p276 = pneg %p176
        $region30: #{tpu_custom_call.1} parent=11 // pred_check_branch
          %278 = sbr.rel (%p276) target = $region32
        $region31: #{tpu_custom_call.1} parent=11 // pred_region
          _
        $region32: #{tpu_custom_call.1} parent=11 // pred_fallthru
          _
        // Predicated region
        $region33: #{tpu_custom_call.1} parent=11 // pred_check
          %p279 = pneg %p197
        $region34: #{tpu_custom_call.1} parent=11 // pred_check_branch
          %281 = sbr.rel (%p279) target = $region36
        $region35: #{tpu_custom_call.1} parent=11 // pred_region
          _
        $region36: #{tpu_custom_call.1} parent=11 // pred_fallthru
          _
      $region12: #{tpu_custom_call.1} parent=5 // pred_fallthru
        _
      %p282 = scmp.lt.s32.totalorder %s19, 2
      // Predicated region
      $region37: #{tpu_custom_call.1} parent=5 // pred_check
        %p283 = pneg %p282
      $region38: #{tpu_custom_call.1} parent=5 // pred_check_branch
        %285 = sbr.rel (%p283) target = $region40
      $region39: #{tpu_custom_call.1} parent=5 // pred_region
        // Predicated region
        $region41: #{tpu_custom_call.1} parent=39 // pred_check
          %p286 = pneg %p39
        $region42: #{tpu_custom_call.1} parent=39 // pred_check_branch
          %288 = sbr.rel (%p286) target = $region44
        $region43: #{tpu_custom_call.1} parent=39 // pred_region
          %s289 = smul.u32 8, %s19
          %p290 = scmp.lt.s32.totalorder %s289, 15
          %s291 = scalar_select %p290, %s289, 15
          %s292 = smul.addr %s291, 2
          %s293 = smul.addr %s292, 4
          %s294 = scalar_lea.vmem %s0, %s293
          %s295 = smul.u32 8, %s19
        $region44: #{tpu_custom_call.1} parent=39 // pred_fallthru
          _
        // Predicated region
        $region45: #{tpu_custom_call.1} parent=39 // pred_check
          %p296 = pneg %p65
        $region46: #{tpu_custom_call.1} parent=39 // pred_check_branch
          %298 = sbr.rel (%p296) target = $region48
        $region47: #{tpu_custom_call.1} parent=39 // pred_region
          %s299 = smul.u32 8, %s19
          %p300 = scmp.lt.s32.totalorder %s299, 15
          %s301 = scalar_select %p300, %s299, 15
          %s302 = smul.addr %s301, 8
          %s303 = scalar_lea.vmem %s1, %s302
          %s304 = smul.u32 8, %s19
        $region48: #{tpu_custom_call.1} parent=39 // pred_fallthru
          _
      $region40: #{tpu_custom_call.1} parent=5 // pred_fallthru
        _
      %p305 = scmp.le.s32.totalorder 1, %s19
      %p306 = scmp.lt.s32.totalorder %s19, 3
      %p307 = pnand %p305, %p306
      %p308 = pneg %p307
      // Predicated region
      $region49: #{tpu_custom_call.1} parent=5 // pred_check
        _
      $region50: #{tpu_custom_call.1} parent=5 // pred_check_branch
        %310 = sbr.rel (%p307) target = $region52
      $region51: #{tpu_custom_call.1} parent=5 // pred_region
        %s311 = ssub.s32 %s19, 1
        %s312 = smul.u32 8, %s24
        %p313 = scmp.lt.s32.totalorder %s312, 15
        %s314 = scalar_select %p313, %s312, 15
        %s315 = smul.addr %s314, 2
        %s316 = smul.addr %s315, 4
        %s317 = scalar_lea.vmem %s0, %s316
        %p318 = pneg %p45
        %p319 = pneg %p42
        %s320 = smul.u32 8, %s24
        %p321 = scmp.lt.s32.totalorder %s320, 15
        %s322 = scalar_select %p321, %s320, 15
        %s323 = smul.addr %s322, 8
        %s324 = scalar_lea.vmem %s1, %s323
        %p325 = pneg %p71
        %p326 = pneg %p68
        %p327 = pneg %p92
        %p328 = pneg %p89
        %p329 = pneg %p113
        %p330 = pneg %p110
        %p331 = pneg %p134
        %p332 = pneg %p131
        %p333 = pneg %p155
        %p334 = pneg %p152
        %p335 = pneg %p176
        %p336 = pneg %p173
        %p337 = pneg %p197
        %p338 = pneg %p194
        %p339 = pneg %p223
        %p340 = pneg %p220
        %s341 = smul.u32 8, %s24
        %p342 = scmp.lt.s32.totalorder %s341, 15
        %s343 = scalar_select %p342, %s341, 15
        %s344 = smul.addr %s343, 8
        %s345 = scalar_lea.vmem %s8, %s344
        %p346 = pneg %p249
        %p347 = pneg %p246
        %s348 = sand.u32 %s236, 1
        %s349 = scalar_lea.sflag [#allocation3], %s348
        %s350 = sand.u32 %s236, 1
        %s351 = smul.addr %s350, 128
        %s352 = scalar_lea.vmem [#allocation2], %s351
        %s353 = smul.u32 8, %s24
        %p354 = scmp.lt.s32.totalorder %s353, 15
        %s355 = scalar_select %p354, %s353, 15
        %s356 = smul.addr %s355, 2
        %s357 = smul.addr %s356, 4
        %s358 = scalar_lea.vmem %s0, %s357
        %s359 = smul.u32 8, %s24
        %s360 = smul.u32 8, %s24
        %p361 = scmp.lt.s32.totalorder %s360, 15
        %s362 = scalar_select %p361, %s360, 15
        %s363 = smul.addr %s362, 8
        %s364 = scalar_lea.vmem %s1, %s363
        %s365 = smul.u32 8, %s24
        %s366 = smul.u32 8, %s24
        %p367 = scmp.lt.s32.totalorder %s366, 15
        %s368 = scalar_select %p367, %s366, 15
        %s369 = smul.addr %s368, 8
        %s370 = scalar_lea.vmem %s8, %s369
        %s371 = smul.u32 8, %s24
        %s372 = smul.u32 8, %s24
        %v373 = vld [vmem:[%s358] sm:$0xff]
        %v374 = vld [vmem:[%s358 + $0x8] sm:$0xff]
        %v375 = vld [vmem:[%s358 + $0x10] sm:$0xff]
        %v376 = vld [vmem:[%s358 + $0x18] sm:$0xff]
        %v377 = vld [vmem:[%s358 + $0x20] sm:$0xff]
        %v378 = vld [vmem:[%s358 + $0x28] sm:$0xff]
        %v379 = vld [vmem:[%s358 + $0x30] sm:$0xff]
        %v380 = vld [vmem:[%s358 + $0x38] sm:$0xff]
        %v381 = vld [vmem:[%s2] sm:$0xff]
        %v382 = vld [vmem:[%s2 + $0x8] sm:$0xff]
        %v383 = vld [vmem:[%s2 + $0x10] sm:$0xff]
        %v384 = vld [vmem:[%s2 + $0x18] sm:$0xff]
        %v385 = vld [vmem:[%s2 + $0x20] sm:$0xff]
        %v386 = vld [vmem:[%s2 + $0x28] sm:$0xff]
        %v387 = vld [vmem:[%s2 + $0x30] sm:$0xff]
        %v388 = vld [vmem:[%s2 + $0x38] sm:$0xff]
        %v389 = vld [vmem:[%s2 + $0x40] sm:$0xff]
        %v390 = vld [vmem:[%s2 + $0x48] sm:$0xff]
        %v391 = vld [vmem:[%s2 + $0x50] sm:$0xff]
        %v392 = vld [vmem:[%s2 + $0x58] sm:$0xff]
        %v393 = vld [vmem:[%s2 + $0x60] sm:$0xff]
        %v394 = vld [vmem:[%s2 + $0x68] sm:$0xff]
        %v395 = vld [vmem:[%s2 + $0x70] sm:$0xff]
        %v396 = vld [vmem:[%s2 + $0x78] sm:$0xff]
        %v397 = vld [vmem:[%s2 + $0x80] sm:$0xff]
        %v398 = vld [vmem:[%s2 + $0x88] sm:$0xff]
        %v399 = vld [vmem:[%s2 + $0x90] sm:$0xff]
        %v400 = vld [vmem:[%s2 + $0x98] sm:$0xff]
        %v401 = vld [vmem:[%s2 + $0xa0] sm:$0xff]
        %v402 = vld [vmem:[%s2 + $0xa8] sm:$0xff]
        %v403 = vld [vmem:[%s2 + $0xb0] sm:$0xff]
        %v404 = vld [vmem:[%s2 + $0xb8] sm:$0xff]
        %v405 = vld [vmem:[%s2 + $0xc0] sm:$0xff]
        %v406 = vld [vmem:[%s2 + $0xc8] sm:$0xff]
        %v407 = vld [vmem:[%s2 + $0xd0] sm:$0xff]
        %v408 = vld [vmem:[%s2 + $0xd8] sm:$0xff]
        %v409 = vld [vmem:[%s2 + $0xe0] sm:$0xff]
        %v410 = vld [vmem:[%s2 + $0xe8] sm:$0xff]
        %v411 = vld [vmem:[%s2 + $0xf0] sm:$0xff]
        %v412 = vld [vmem:[%s2 + $0xf8] sm:$0xff]
        %v413 = vld [vmem:[%s3] sm:$0x3]
        %v415 = vperm.slane %v413, 0
        %v416 = vperm.slane %v413, 1
        %v427 = vunpack.c.l.b16 %v373
        %v428 = vunpack.c.h.b16 %v373
        %v429 = vunpack.c.l.b16 %v374
        %v430 = vunpack.c.h.b16 %v374
        %v431 = vunpack.c.l.b16 %v375
        %v432 = vunpack.c.h.b16 %v375
        %v433 = vunpack.c.l.b16 %v376
        %v434 = vunpack.c.h.b16 %v376
        %v435 = vunpack.c.l.b16 %v377
        %v436 = vunpack.c.h.b16 %v377
        %v437 = vunpack.c.l.b16 %v378
        %v438 = vunpack.c.h.b16 %v378
        %v439 = vunpack.c.l.b16 %v379
        %v440 = vunpack.c.h.b16 %v379
        %v441 = vunpack.c.l.b16 %v380
        %v442 = vunpack.c.h.b16 %v380
        %v443 = vpack.c.b16 %v429, %v427
        %v444 = vpack.c.b16 %v430, %v428
        %v445 = vpack.c.b16 %v433, %v431
        %v446 = vpack.c.b16 %v434, %v432
        %v447 = vpack.c.b16 %v437, %v435
        %v448 = vpack.c.b16 %v438, %v436
        %v449 = vpack.c.b16 %v441, %v439
        %v450 = vpack.c.b16 %v442, %v440
        %v491 = vunpack.c.l.b16 %v381
        %v492 = vunpack.c.h.b16 %v381
        %v493 = vunpack.c.l.b16 %v382
        %v494 = vunpack.c.h.b16 %v382
        %v495 = vunpack.c.l.b16 %v383
        %v496 = vunpack.c.h.b16 %v383
        %v497 = vunpack.c.l.b16 %v384
        %v498 = vunpack.c.h.b16 %v384
        %v499 = vunpack.c.l.b16 %v385
        %v500 = vunpack.c.h.b16 %v385
        %v501 = vunpack.c.l.b16 %v386
        %v502 = vunpack.c.h.b16 %v386
        %v503 = vunpack.c.l.b16 %v387
        %v504 = vunpack.c.h.b16 %v387
        %v505 = vunpack.c.l.b16 %v388
        %v506 = vunpack.c.h.b16 %v388
        %v507 = vunpack.c.l.b16 %v389
        %v508 = vunpack.c.h.b16 %v389
        %v509 = vunpack.c.l.b16 %v390
        %v510 = vunpack.c.h.b16 %v390
        %v511 = vunpack.c.l.b16 %v391
        %v512 = vunpack.c.h.b16 %v391
        %v513 = vunpack.c.l.b16 %v392
        %v514 = vunpack.c.h.b16 %v392
        %v515 = vunpack.c.l.b16 %v393
        %v516 = vunpack.c.h.b16 %v393
        %v517 = vunpack.c.l.b16 %v394
        %v518 = vunpack.c.h.b16 %v394
        %v519 = vunpack.c.l.b16 %v395
        %v520 = vunpack.c.h.b16 %v395
        %v521 = vunpack.c.l.b16 %v396
        %v522 = vunpack.c.h.b16 %v396
        %v523 = vunpack.c.l.b16 %v397
        %v524 = vunpack.c.h.b16 %v397
        %v525 = vunpack.c.l.b16 %v398
        %v526 = vunpack.c.h.b16 %v398
        %v527 = vunpack.c.l.b16 %v399
        %v528 = vunpack.c.h.b16 %v399
        %v529 = vunpack.c.l.b16 %v400
        %v530 = vunpack.c.h.b16 %v400
        %v531 = vunpack.c.l.b16 %v401
        %v532 = vunpack.c.h.b16 %v401
        %v533 = vunpack.c.l.b16 %v402
        %v534 = vunpack.c.h.b16 %v402
        %v535 = vunpack.c.l.b16 %v403
        %v536 = vunpack.c.h.b16 %v403
        %v537 = vunpack.c.l.b16 %v404
        %v538 = vunpack.c.h.b16 %v404
        %v539 = vunpack.c.l.b16 %v405
        %v540 = vunpack.c.h.b16 %v405
        %v541 = vunpack.c.l.b16 %v406
        %v542 = vunpack.c.h.b16 %v406
        %v543 = vunpack.c.l.b16 %v407
        %v544 = vunpack.c.h.b16 %v407
        %v545 = vunpack.c.l.b16 %v408
        %v546 = vunpack.c.h.b16 %v408
        %v547 = vunpack.c.l.b16 %v409
        %v548 = vunpack.c.h.b16 %v409
        %v549 = vunpack.c.l.b16 %v410
        %v550 = vunpack.c.h.b16 %v410
        %v551 = vunpack.c.l.b16 %v411
        %v552 = vunpack.c.h.b16 %v411
        %v553 = vunpack.c.l.b16 %v412
        %v554 = vunpack.c.h.b16 %v412
        %v555 = vpack.c.b16 %v493, %v491
        %v556 = vpack.c.b16 %v494, %v492
        %v557 = vpack.c.b16 %v497, %v495
        %v558 = vpack.c.b16 %v498, %v496
        %v559 = vpack.c.b16 %v501, %v499
        %v560 = vpack.c.b16 %v502, %v500
        %v561 = vpack.c.b16 %v505, %v503
        %v562 = vpack.c.b16 %v506, %v504
        %v563 = vpack.c.b16 %v509, %v507
        %v564 = vpack.c.b16 %v510, %v508
        %v565 = vpack.c.b16 %v513, %v511
        %v566 = vpack.c.b16 %v514, %v512
        %v567 = vpack.c.b16 %v517, %v515
        %v568 = vpack.c.b16 %v518, %v516
        %v569 = vpack.c.b16 %v521, %v519
        %v570 = vpack.c.b16 %v522, %v520
        %v571 = vpack.c.b16 %v525, %v523
        %v572 = vpack.c.b16 %v526, %v524
        %v573 = vpack.c.b16 %v529, %v527
        %v574 = vpack.c.b16 %v530, %v528
        %v575 = vpack.c.b16 %v533, %v531
        %v576 = vpack.c.b16 %v534, %v532
        %v577 = vpack.c.b16 %v537, %v535
        %v578 = vpack.c.b16 %v538, %v536
        %v579 = vpack.c.b16 %v541, %v539
        %v580 = vpack.c.b16 %v542, %v540
        %v581 = vpack.c.b16 %v545, %v543
        %v582 = vpack.c.b16 %v546, %v544
        %v583 = vpack.c.b16 %v549, %v547
        %v584 = vpack.c.b16 %v550, %v548
        %v585 = vpack.c.b16 %v553, %v551
        %v586 = vpack.c.b16 %v554, %v552
        %619 = vmatpush.bf16.msra.mxu0 %v569
        %620 = vmatpush.bf16.msra.mxu0 %v567
        %621 = vmatpush.bf16.msra.mxu0 %v565
        %622 = vmatpush.bf16.msra.mxu0 %v563
        %623 = vmatpush.bf16.msra.mxu0 %v561
        %624 = vmatpush.bf16.msra.mxu0 %v559
        %625 = vmatpush.bf16.msra.mxu0 %v557
        %626 = vmatpush.bf16.msra.mxu0 %v555
        %627 = vmatmul.bf16.gmra.mxu0 %v443
        %v628 = vpop.f32.mrf.mxu0
        %v629 = vadd.f32 %v415, %v628
        %v630 = vpop.f32.mrf.mxu0
        %v631 = vadd.f32 %v415, %v630
        %632 = vmatmul.bf16.gmra.mxu0 %v445
        %v633 = vpop.f32.mrf.mxu0
        %v634 = vadd.f32 %v415, %v633
        %v635 = vpop.f32.mrf.mxu0
        %v636 = vadd.f32 %v415, %v635
        %637 = vmatmul.bf16.gmra.mxu0 %v447
        %v638 = vpop.f32.mrf.mxu0
        %v639 = vadd.f32 %v415, %v638
        %v640 = vpop.f32.mrf.mxu0
        %v641 = vadd.f32 %v415, %v640
        %642 = vmatmul.bf16.gmra.mxu0 %v449
        %v643 = vpop.f32.mrf.mxu0
        %v644 = vadd.f32 %v415, %v643
        %v645 = vpop.f32.mrf.mxu0
        %v646 = vadd.f32 %v415, %v645
        %647 = vdwg.mxu0
        %648 = vmatpush.bf16.msra.mxu0 %v585
        %649 = vmatpush.bf16.msra.mxu0 %v583
        %650 = vmatpush.bf16.msra.mxu0 %v581
        %651 = vmatpush.bf16.msra.mxu0 %v579
        %652 = vmatpush.bf16.msra.mxu0 %v577
        %653 = vmatpush.bf16.msra.mxu0 %v575
        %654 = vmatpush.bf16.msra.mxu0 %v573
        %655 = vmatpush.bf16.msra.mxu0 %v571
        %656 = vmatmul.bf16.gmra.mxu0 %v444
        %v657 = vpop.f32.mrf.mxu0
        %v658 = vadd.f32 %v629, %v657
        %v659 = vpop.f32.mrf.mxu0
        %v660 = vadd.f32 %v631, %v659
        %661 = vmatmul.bf16.gmra.mxu0 %v446
        %v662 = vpop.f32.mrf.mxu0
        %v663 = vadd.f32 %v634, %v662
        %v664 = vpop.f32.mrf.mxu0
        %v665 = vadd.f32 %v636, %v664
        %666 = vmatmul.bf16.gmra.mxu0 %v448
        %v667 = vpop.f32.mrf.mxu0
        %v668 = vadd.f32 %v639, %v667
        %v669 = vpop.f32.mrf.mxu0
        %v670 = vadd.f32 %v641, %v669
        %671 = vmatmul.bf16.gmra.mxu0 %v450
        %v672 = vpop.f32.mrf.mxu0
        %v673 = vadd.f32 %v644, %v672
        %v674 = vpop.f32.mrf.mxu0
        %v675 = vadd.f32 %v646, %v674
        %676 = vdwg.mxu0
        %677 = vmatpush.bf16.msra.mxu0 %v570
        %678 = vmatpush.bf16.msra.mxu0 %v568
        %679 = vmatpush.bf16.msra.mxu0 %v566
        %680 = vmatpush.bf16.msra.mxu0 %v564
        %681 = vmatpush.bf16.msra.mxu0 %v562
        %682 = vmatpush.bf16.msra.mxu0 %v560
        %683 = vmatpush.bf16.msra.mxu0 %v558
        %684 = vmatpush.bf16.msra.mxu0 %v556
        %685 = vmatmul.bf16.gmra.mxu0 %v443
        %v686 = vpop.f32.mrf.mxu0
        %v687 = vadd.f32 %v416, %v686
        %v688 = vpop.f32.mrf.mxu0
        %v689 = vadd.f32 %v416, %v688
        %690 = vmatmul.bf16.gmra.mxu0 %v445
        %v691 = vpop.f32.mrf.mxu0
        %v692 = vadd.f32 %v416, %v691
        %v693 = vpop.f32.mrf.mxu0
        %v694 = vadd.f32 %v416, %v693
        %695 = vmatmul.bf16.gmra.mxu0 %v447
        %v696 = vpop.f32.mrf.mxu0
        %v697 = vadd.f32 %v416, %v696
        %v698 = vpop.f32.mrf.mxu0
        %v699 = vadd.f32 %v416, %v698
        %700 = vmatmul.bf16.gmra.mxu0 %v449
        %v701 = vpop.f32.mrf.mxu0
        %v702 = vadd.f32 %v416, %v701
        %v703 = vpop.f32.mrf.mxu0
        %v704 = vadd.f32 %v416, %v703
        %705 = vdwg.mxu0
        %706 = vmatpush.bf16.msra.mxu0 %v586
        %707 = vmatpush.bf16.msra.mxu0 %v584
        %708 = vmatpush.bf16.msra.mxu0 %v582
        %709 = vmatpush.bf16.msra.mxu0 %v580
        %710 = vmatpush.bf16.msra.mxu0 %v578
        %711 = vmatpush.bf16.msra.mxu0 %v576
        %712 = vmatpush.bf16.msra.mxu0 %v574
        %713 = vmatpush.bf16.msra.mxu0 %v572
        %714 = vmatmul.bf16.gmra.mxu0 %v444
        %v715 = vpop.f32.mrf.mxu0
        %v716 = vadd.f32 %v687, %v715
        %v717 = vpop.f32.mrf.mxu0
        %v718 = vadd.f32 %v689, %v717
        %719 = vmatmul.bf16.gmra.mxu0 %v446
        %v720 = vpop.f32.mrf.mxu0
        %v721 = vadd.f32 %v692, %v720
        %v722 = vpop.f32.mrf.mxu0
        %v723 = vadd.f32 %v694, %v722
        %724 = vmatmul.bf16.gmra.mxu0 %v448
        %v725 = vpop.f32.mrf.mxu0
        %v726 = vadd.f32 %v697, %v725
        %v727 = vpop.f32.mrf.mxu0
        %v728 = vadd.f32 %v699, %v727
        %729 = vmatmul.bf16.gmra.mxu0 %v450
        %v730 = vpop.f32.mrf.mxu0
        %v731 = vadd.f32 %v702, %v730
        %v732 = vpop.f32.mrf.mxu0
        %v733 = vadd.f32 %v704, %v732
        %734 = vdwg.mxu0
        %v735 = vmax.f32 %v658, 0.0
        %v736 = vmax.f32 %v716, 0.0
        %v737 = vmax.f32 %v660, 0.0
        %v738 = vmax.f32 %v718, 0.0
        %v739 = vmax.f32 %v663, 0.0
        %v740 = vmax.f32 %v721, 0.0
        %v741 = vmax.f32 %v665, 0.0
        %v742 = vmax.f32 %v723, 0.0
        %v743 = vmax.f32 %v668, 0.0
        %v744 = vmax.f32 %v726, 0.0
        %v745 = vmax.f32 %v670, 0.0
        %v746 = vmax.f32 %v728, 0.0
        %v747 = vmax.f32 %v673, 0.0
        %v748 = vmax.f32 %v731, 0.0
        %v749 = vmax.f32 %v675, 0.0
        %v750 = vmax.f32 %v733, 0.0
        %v751 = vpack.c.bf16 %v737, %v735
        %v752 = vpack.c.bf16 %v738, %v736
        %v753 = vpack.c.bf16 %v741, %v739
        %v754 = vpack.c.bf16 %v742, %v740
        %v755 = vpack.c.bf16 %v745, %v743
        %v756 = vpack.c.bf16 %v746, %v744
        %v757 = vpack.c.bf16 %v749, %v747
        %v758 = vpack.c.bf16 %v750, %v748
        %v759 = vld [vmem:[%s4] sm:$0xff]
        %v760 = vld [vmem:[%s4 + $0x8] sm:$0xff]
        %v761 = vld [vmem:[%s4 + $0x10] sm:$0xff]
        %v762 = vld [vmem:[%s4 + $0x18] sm:$0xff]
        %v763 = vld [vmem:[%s4 + $0x20] sm:$0xff]
        %v764 = vld [vmem:[%s4 + $0x28] sm:$0xff]
        %v765 = vld [vmem:[%s4 + $0x30] sm:$0xff]
        %v766 = vld [vmem:[%s4 + $0x38] sm:$0xff]
        %v767 = vld [vmem:[%s4 + $0x40] sm:$0xff]
        %v768 = vld [vmem:[%s4 + $0x48] sm:$0xff]
        %v769 = vld [vmem:[%s4 + $0x50] sm:$0xff]
        %v770 = vld [vmem:[%s4 + $0x58] sm:$0xff]
        %v771 = vld [vmem:[%s4 + $0x60] sm:$0xff]
        %v772 = vld [vmem:[%s4 + $0x68] sm:$0xff]
        %v773 = vld [vmem:[%s4 + $0x70] sm:$0xff]
        %v774 = vld [vmem:[%s4 + $0x78] sm:$0xff]
        %v775 = vld [vmem:[%s4 + $0x80] sm:$0xff]
        %v776 = vld [vmem:[%s4 + $0x88] sm:$0xff]
        %v777 = vld [vmem:[%s4 + $0x90] sm:$0xff]
        %v778 = vld [vmem:[%s4 + $0x98] sm:$0xff]
        %v779 = vld [vmem:[%s4 + $0xa0] sm:$0xff]
        %v780 = vld [vmem:[%s4 + $0xa8] sm:$0xff]
        %v781 = vld [vmem:[%s4 + $0xb0] sm:$0xff]
        %v782 = vld [vmem:[%s4 + $0xb8] sm:$0xff]
        %v783 = vld [vmem:[%s4 + $0xc0] sm:$0xff]
        %v784 = vld [vmem:[%s4 + $0xc8] sm:$0xff]
        %v785 = vld [vmem:[%s4 + $0xd0] sm:$0xff]
        %v786 = vld [vmem:[%s4 + $0xd8] sm:$0xff]
        %v787 = vld [vmem:[%s4 + $0xe0] sm:$0xff]
        %v788 = vld [vmem:[%s4 + $0xe8] sm:$0xff]
        %v789 = vld [vmem:[%s4 + $0xf0] sm:$0xff]
        %v790 = vld [vmem:[%s4 + $0xf8] sm:$0xff]
        %v791 = vld [vmem:[%s5] sm:$0x3]
        %v793 = vperm.slane %v791, 0
        %v794 = vperm.slane %v791, 1
        %v829 = vunpack.c.l.b16 %v759
        %v830 = vunpack.c.h.b16 %v759
        %v831 = vunpack.c.l.b16 %v760
        %v832 = vunpack.c.h.b16 %v760
        %v833 = vunpack.c.l.b16 %v761
        %v834 = vunpack.c.h.b16 %v761
        %v835 = vunpack.c.l.b16 %v762
        %v836 = vunpack.c.h.b16 %v762
        %v837 = vunpack.c.l.b16 %v763
        %v838 = vunpack.c.h.b16 %v763
        %v839 = vunpack.c.l.b16 %v764
        %v840 = vunpack.c.h.b16 %v764
        %v841 = vunpack.c.l.b16 %v765
        %v842 = vunpack.c.h.b16 %v765
        %v843 = vunpack.c.l.b16 %v766
        %v844 = vunpack.c.h.b16 %v766
        %v845 = vunpack.c.l.b16 %v767
        %v846 = vunpack.c.h.b16 %v767
        %v847 = vunpack.c.l.b16 %v768
        %v848 = vunpack.c.h.b16 %v768
        %v849 = vunpack.c.l.b16 %v769
        %v850 = vunpack.c.h.b16 %v769
        %v851 = vunpack.c.l.b16 %v770
        %v852 = vunpack.c.h.b16 %v770
        %v853 = vunpack.c.l.b16 %v771
        %v854 = vunpack.c.h.b16 %v771
        %v855 = vunpack.c.l.b16 %v772
        %v856 = vunpack.c.h.b16 %v772
        %v857 = vunpack.c.l.b16 %v773
        %v858 = vunpack.c.h.b16 %v773
        %v859 = vunpack.c.l.b16 %v774
        %v860 = vunpack.c.h.b16 %v774
        %v861 = vunpack.c.l.b16 %v775
        %v862 = vunpack.c.h.b16 %v775
        %v863 = vunpack.c.l.b16 %v776
        %v864 = vunpack.c.h.b16 %v776
        %v865 = vunpack.c.l.b16 %v777
        %v866 = vunpack.c.h.b16 %v777
        %v867 = vunpack.c.l.b16 %v778
        %v868 = vunpack.c.h.b16 %v778
        %v869 = vunpack.c.l.b16 %v779
        %v870 = vunpack.c.h.b16 %v779
        %v871 = vunpack.c.l.b16 %v780
        %v872 = vunpack.c.h.b16 %v780
        %v873 = vunpack.c.l.b16 %v781
        %v874 = vunpack.c.h.b16 %v781
        %v875 = vunpack.c.l.b16 %v782
        %v876 = vunpack.c.h.b16 %v782
        %v877 = vunpack.c.l.b16 %v783
        %v878 = vunpack.c.h.b16 %v783
        %v879 = vunpack.c.l.b16 %v784
        %v880 = vunpack.c.h.b16 %v784
        %v881 = vunpack.c.l.b16 %v785
        %v882 = vunpack.c.h.b16 %v785
        %v883 = vunpack.c.l.b16 %v786
        %v884 = vunpack.c.h.b16 %v786
        %v885 = vunpack.c.l.b16 %v787
        %v886 = vunpack.c.h.b16 %v787
        %v887 = vunpack.c.l.b16 %v788
        %v888 = vunpack.c.h.b16 %v788
        %v889 = vunpack.c.l.b16 %v789
        %v890 = vunpack.c.h.b16 %v789
        %v891 = vunpack.c.l.b16 %v790
        %v892 = vunpack.c.h.b16 %v790
        %v893 = vpack.c.b16 %v831, %v829
        %v894 = vpack.c.b16 %v832, %v830
        %v895 = vpack.c.b16 %v835, %v833
        %v896 = vpack.c.b16 %v836, %v834
        %v897 = vpack.c.b16 %v839, %v837
        %v898 = vpack.c.b16 %v840, %v838
        %v899 = vpack.c.b16 %v843, %v841
        %v900 = vpack.c.b16 %v844, %v842
        %v901 = vpack.c.b16 %v847, %v845
        %v902 = vpack.c.b16 %v848, %v846
        %v903 = vpack.c.b16 %v851, %v849
        %v904 = vpack.c.b16 %v852, %v850
        %v905 = vpack.c.b16 %v855, %v853
        %v906 = vpack.c.b16 %v856, %v854
        %v907 = vpack.c.b16 %v859, %v857
        %v908 = vpack.c.b16 %v860, %v858
        %v909 = vpack.c.b16 %v863, %v861
        %v910 = vpack.c.b16 %v864, %v862
        %v911 = vpack.c.b16 %v867, %v865
        %v912 = vpack.c.b16 %v868, %v866
        %v913 = vpack.c.b16 %v871, %v869
        %v914 = vpack.c.b16 %v872, %v870
        %v915 = vpack.c.b16 %v875, %v873
        %v916 = vpack.c.b16 %v876, %v874
        %v917 = vpack.c.b16 %v879, %v877
        %v918 = vpack.c.b16 %v880, %v878
        %v919 = vpack.c.b16 %v883, %v881
        %v920 = vpack.c.b16 %v884, %v882
        %v921 = vpack.c.b16 %v887, %v885
        %v922 = vpack.c.b16 %v888, %v886
        %v923 = vpack.c.b16 %v891, %v889
        %v924 = vpack.c.b16 %v892, %v890
        %957 = vmatpush.bf16.msra.mxu0 %v907
        %958 = vmatpush.bf16.msra.mxu0 %v905
        %959 = vmatpush.bf16.msra.mxu0 %v903
        %960 = vmatpush.bf16.msra.mxu0 %v901
        %961 = vmatpush.bf16.msra.mxu0 %v899
        %962 = vmatpush.bf16.msra.mxu0 %v897
        %963 = vmatpush.bf16.msra.mxu0 %v895
        %964 = vmatpush.bf16.msra.mxu0 %v893
        %965 = vmatmul.bf16.gmra.mxu0 %v751
        %v966 = vpop.f32.mrf.mxu0
        %v967 = vadd.f32 %v793, %v966
        %v968 = vpop.f32.mrf.mxu0
        %v969 = vadd.f32 %v793, %v968
        %970 = vmatmul.bf16.gmra.mxu0 %v753
        %v971 = vpop.f32.mrf.mxu0
        %v972 = vadd.f32 %v793, %v971
        %v973 = vpop.f32.mrf.mxu0
        %v974 = vadd.f32 %v793, %v973
        %975 = vmatmul.bf16.gmra.mxu0 %v755
        %v976 = vpop.f32.mrf.mxu0
        %v977 = vadd.f32 %v793, %v976
        %v978 = vpop.f32.mrf.mxu0
        %v979 = vadd.f32 %v793, %v978
        %980 = vmatmul.bf16.gmra.mxu0 %v757
        %v981 = vpop.f32.mrf.mxu0
        %v982 = vadd.f32 %v793, %v981
        %v983 = vpop.f32.mrf.mxu0
        %v984 = vadd.f32 %v793, %v983
        %985 = vdwg.mxu0
        %986 = vmatpush.bf16.msra.mxu0 %v923
        %987 = vmatpush.bf16.msra.mxu0 %v921
        %988 = vmatpush.bf16.msra.mxu0 %v919
        %989 = vmatpush.bf16.msra.mxu0 %v917
        %990 = vmatpush.bf16.msra.mxu0 %v915
        %991 = vmatpush.bf16.msra.mxu0 %v913
        %992 = vmatpush.bf16.msra.mxu0 %v911
        %993 = vmatpush.bf16.msra.mxu0 %v909
        %994 = vmatmul.bf16.gmra.mxu0 %v752
        %v995 = vpop.f32.mrf.mxu0
        %v996 = vadd.f32 %v967, %v995
        %v997 = vpop.f32.mrf.mxu0
        %v998 = vadd.f32 %v969, %v997
        %999 = vmatmul.bf16.gmra.mxu0 %v754
        %v1000 = vpop.f32.mrf.mxu0
        %v1001 = vadd.f32 %v972, %v1000
        %v1002 = vpop.f32.mrf.mxu0
        %v1003 = vadd.f32 %v974, %v1002
        %1004 = vmatmul.bf16.gmra.mxu0 %v756
        %v1005 = vpop.f32.mrf.mxu0
        %v1006 = vadd.f32 %v977, %v1005
        %v1007 = vpop.f32.mrf.mxu0
        %v1008 = vadd.f32 %v979, %v1007
        %1009 = vmatmul.bf16.gmra.mxu0 %v758
        %v1010 = vpop.f32.mrf.mxu0
        %v1011 = vadd.f32 %v982, %v1010
        %v1012 = vpop.f32.mrf.mxu0
        %v1013 = vadd.f32 %v984, %v1012
        %1014 = vdwg.mxu0
        %1015 = vmatpush.bf16.msra.mxu0 %v908
        %1016 = vmatpush.bf16.msra.mxu0 %v906
        %1017 = vmatpush.bf16.msra.mxu0 %v904
        %1018 = vmatpush.bf16.msra.mxu0 %v902
        %1019 = vmatpush.bf16.msra.mxu0 %v900
        %1020 = vmatpush.bf16.msra.mxu0 %v898
        %1021 = vmatpush.bf16.msra.mxu0 %v896
        %1022 = vmatpush.bf16.msra.mxu0 %v894
        %1023 = vmatmul.bf16.gmra.mxu0 %v751
        %v1024 = vpop.f32.mrf.mxu0
        %v1025 = vadd.f32 %v794, %v1024
        %v1026 = vpop.f32.mrf.mxu0
        %v1027 = vadd.f32 %v794, %v1026
        %1028 = vmatmul.bf16.gmra.mxu0 %v753
        %v1029 = vpop.f32.mrf.mxu0
        %v1030 = vadd.f32 %v794, %v1029
        %v1031 = vpop.f32.mrf.mxu0
        %v1032 = vadd.f32 %v794, %v1031
        %1033 = vmatmul.bf16.gmra.mxu0 %v755
        %v1034 = vpop.f32.mrf.mxu0
        %v1035 = vadd.f32 %v794, %v1034
        %v1036 = vpop.f32.mrf.mxu0
        %v1037 = vadd.f32 %v794, %v1036
        %1038 = vmatmul.bf16.gmra.mxu0 %v757
        %v1039 = vpop.f32.mrf.mxu0
        %v1040 = vadd.f32 %v794, %v1039
        %v1041 = vpop.f32.mrf.mxu0
        %v1042 = vadd.f32 %v794, %v1041
        %1043 = vdwg.mxu0
        %1044 = vmatpush.bf16.msra.mxu0 %v924
        %1045 = vmatpush.bf16.msra.mxu0 %v922
        %1046 = vmatpush.bf16.msra.mxu0 %v920
        %1047 = vmatpush.bf16.msra.mxu0 %v918
        %1048 = vmatpush.bf16.msra.mxu0 %v916
        %1049 = vmatpush.bf16.msra.mxu0 %v914
        %1050 = vmatpush.bf16.msra.mxu0 %v912
        %1051 = vmatpush.bf16.msra.mxu0 %v910
        %1052 = vmatmul.bf16.gmra.mxu0 %v752
        %v1053 = vpop.f32.mrf.mxu0
        %v1054 = vadd.f32 %v1025, %v1053
        %v1055 = vpop.f32.mrf.mxu0
        %v1056 = vadd.f32 %v1027, %v1055
        %1057 = vmatmul.bf16.gmra.mxu0 %v754
        %v1058 = vpop.f32.mrf.mxu0
        %v1059 = vadd.f32 %v1030, %v1058
        %v1060 = vpop.f32.mrf.mxu0
        %v1061 = vadd.f32 %v1032, %v1060
        %1062 = vmatmul.bf16.gmra.mxu0 %v756
        %v1063 = vpop.f32.mrf.mxu0
        %v1064 = vadd.f32 %v1035, %v1063
        %v1065 = vpop.f32.mrf.mxu0
        %v1066 = vadd.f32 %v1037, %v1065
        %1067 = vmatmul.bf16.gmra.mxu0 %v758
        %v1068 = vpop.f32.mrf.mxu0
        %v1069 = vadd.f32 %v1040, %v1068
        %v1070 = vpop.f32.mrf.mxu0
        %v1071 = vadd.f32 %v1042, %v1070
        %1072 = vdwg.mxu0
        %v1073 = vmax.f32 %v996, 0.0
        %v1074 = vmax.f32 %v1054, 0.0
        %v1075 = vmax.f32 %v998, 0.0
        %v1076 = vmax.f32 %v1056, 0.0
        %v1077 = vmax.f32 %v1001, 0.0
        %v1078 = vmax.f32 %v1059, 0.0
        %v1079 = vmax.f32 %v1003, 0.0
        %v1080 = vmax.f32 %v1061, 0.0
        %v1081 = vmax.f32 %v1006, 0.0
        %v1082 = vmax.f32 %v1064, 0.0
        %v1083 = vmax.f32 %v1008, 0.0
        %v1084 = vmax.f32 %v1066, 0.0
        %v1085 = vmax.f32 %v1011, 0.0
        %v1086 = vmax.f32 %v1069, 0.0
        %v1087 = vmax.f32 %v1013, 0.0
        %v1088 = vmax.f32 %v1071, 0.0
        %v1089 = vpack.c.bf16 %v1075, %v1073
        %v1090 = vpack.c.bf16 %v1076, %v1074
        %v1091 = vpack.c.bf16 %v1079, %v1077
        %v1092 = vpack.c.bf16 %v1080, %v1078
        %v1093 = vpack.c.bf16 %v1083, %v1081
        %v1094 = vpack.c.bf16 %v1084, %v1082
        %v1095 = vpack.c.bf16 %v1087, %v1085
        %v1096 = vpack.c.bf16 %v1088, %v1086
        %v1097 = vld [vmem:[%s6] sm:$0xff]
        %v1098 = vld [vmem:[%s6 + $0x8] sm:$0xff]
        %v1099 = vld [vmem:[%s6 + $0x10] sm:$0xf]
        %v1100 = vld [vmem:[%s6 + $0x14] sm:$0xff]
        %v1101 = vld [vmem:[%s6 + $0x1c] sm:$0xff]
        %v1102 = vld [vmem:[%s6 + $0x24] sm:$0xf]
        %v1103 = vld [vmem:[%s6 + $0x28] sm:$0xff]
        %v1104 = vld [vmem:[%s6 + $0x30] sm:$0xff]
        %v1105 = vld [vmem:[%s6 + $0x38] sm:$0xf]
        %v1106 = vld [vmem:[%s6 + $0x3c] sm:$0xff]
        %v1107 = vld [vmem:[%s6 + $0x44] sm:$0xff]
        %v1108 = vld [vmem:[%s6 + $0x4c] sm:$0xf]
        %v1109 = vld [vmem:[%s6 + $0x50] sm:$0xff]
        %v1110 = vld [vmem:[%s6 + $0x58] sm:$0xff]
        %v1111 = vld [vmem:[%s6 + $0x60] sm:$0xf]
        %v1112 = vld [vmem:[%s6 + $0x64] sm:$0xff]
        %v1113 = vld [vmem:[%s6 + $0x6c] sm:$0xff]
        %v1114 = vld [vmem:[%s6 + $0x74] sm:$0xf]
        %v1115 = vld [vmem:[%s6 + $0x78] sm:$0xff]
        %v1116 = vld [vmem:[%s6 + $0x80] sm:$0xff]
        %v1117 = vld [vmem:[%s6 + $0x88] sm:$0xf]
        %v1118 = vld [vmem:[%s6 + $0x8c] sm:$0xff]
        %v1119 = vld [vmem:[%s6 + $0x94] sm:$0xff]
        %v1120 = vld [vmem:[%s6 + $0x9c] sm:$0xf]
        %v1121 = vld [vmem:[%s6 + $0xa0] sm:$0xff]
        %v1122 = vld [vmem:[%s6 + $0xa8] sm:$0xff]
        %v1123 = vld [vmem:[%s6 + $0xb0] sm:$0xf]
        %v1124 = vld [vmem:[%s6 + $0xb4] sm:$0xff]
        %v1125 = vld [vmem:[%s6 + $0xbc] sm:$0xff]
        %v1126 = vld [vmem:[%s6 + $0xc4] sm:$0xf]
        %v1127 = vld [vmem:[%s6 + $0xc8] sm:$0xff]
        %v1128 = vld [vmem:[%s6 + $0xd0] sm:$0xff]
        %v1129 = vld [vmem:[%s6 + $0xd8] sm:$0xf]
        %v1130 = vld [vmem:[%s6 + $0xdc] sm:$0xff]
        %v1131 = vld [vmem:[%s6 + $0xe4] sm:$0xff]
        %v1132 = vld [vmem:[%s6 + $0xec] sm:$0xf]
        %v1133 = vld [vmem:[%s6 + $0xf0] sm:$0xff]
        %v1134 = vld [vmem:[%s6 + $0xf8] sm:$0xff]
        %v1135 = vld [vmem:[%s6 + $0x100] sm:$0xf]
        %v1136 = vld [vmem:[%s6 + $0x104] sm:$0xff]
        %v1137 = vld [vmem:[%s6 + $0x10c] sm:$0xff]
        %v1138 = vld [vmem:[%s6 + $0x114] sm:$0xf]
        %v1139 = vld [vmem:[%s6 + $0x118] sm:$0xff]
        %v1140 = vld [vmem:[%s6 + $0x120] sm:$0xff]
        %v1141 = vld [vmem:[%s6 + $0x128] sm:$0xf]
        %v1142 = vld [vmem:[%s6 + $0x12c] sm:$0xff]
        %v1143 = vld [vmem:[%s6 + $0x134] sm:$0xff]
        %v1144 = vld [vmem:[%s6 + $0x13c] sm:$0xf]
        %v1145 = vld [vmem:[%s6 + $0x140] sm:$0xff]
        %v1146 = vld [vmem:[%s6 + $0x148] sm:$0xff]
        %v1147 = vld [vmem:[%s6 + $0x150] sm:$0xf]
        %v1148 = vld [vmem:[%s6 + $0x154] sm:$0xff]
        %v1149 = vld [vmem:[%s6 + $0x15c] sm:$0xff]
        %v1150 = vld [vmem:[%s6 + $0x164] sm:$0xf]
        %v1151 = vld [vmem:[%s6 + $0x168] sm:$0xff]
        %v1152 = vld [vmem:[%s6 + $0x170] sm:$0xff]
        %v1153 = vld [vmem:[%s6 + $0x178] sm:$0xf]
        %v1154 = vld [vmem:[%s6 + $0x17c] sm:$0xff]
        %v1155 = vld [vmem:[%s6 + $0x184] sm:$0xff]
        %v1156 = vld [vmem:[%s6 + $0x18c] sm:$0xf]
        %v1157 = vld [vmem:[%s6 + $0x190] sm:$0xff]
        %v1158 = vld [vmem:[%s6 + $0x198] sm:$0xff]
        %v1159 = vld [vmem:[%s6 + $0x1a0] sm:$0xf]
        %v1160 = vld [vmem:[%s6 + $0x1a4] sm:$0xff]
        %v1161 = vld [vmem:[%s6 + $0x1ac] sm:$0xff]
        %v1162 = vld [vmem:[%s6 + $0x1b4] sm:$0xf]
        %v1163 = vld [vmem:[%s6 + $0x1b8] sm:$0xff]
        %v1164 = vld [vmem:[%s6 + $0x1c0] sm:$0xff]
        %v1165 = vld [vmem:[%s6 + $0x1c8] sm:$0xf]
        %v1166 = vld [vmem:[%s6 + $0x1cc] sm:$0xff]
        %v1167 = vld [vmem:[%s6 + $0x1d4] sm:$0xff]
        %v1168 = vld [vmem:[%s6 + $0x1dc] sm:$0xf]
        %v1169 = vld [vmem:[%s6 + $0x1e0] sm:$0xff]
        %v1170 = vld [vmem:[%s6 + $0x1e8] sm:$0xff]
        %v1171 = vld [vmem:[%s6 + $0x1f0] sm:$0xf]
        %v1172 = vld [vmem:[%s6 + $0x1f4] sm:$0xff]
        %v1173 = vld [vmem:[%s6 + $0x1fc] sm:$0xff]
        %v1174 = vld [vmem:[%s6 + $0x204] sm:$0xf]
        %v1175 = vld [vmem:[%s6 + $0x208] sm:$0xff]
        %v1176 = vld [vmem:[%s6 + $0x210] sm:$0xff]
        %v1177 = vld [vmem:[%s6 + $0x218] sm:$0xf]
        %v1178 = vld [vmem:[%s6 + $0x21c] sm:$0xff]
        %v1179 = vld [vmem:[%s6 + $0x224] sm:$0xff]
        %v1180 = vld [vmem:[%s6 + $0x22c] sm:$0xf]
        %v1181 = vld [vmem:[%s6 + $0x230] sm:$0xff]
        %v1182 = vld [vmem:[%s6 + $0x238] sm:$0xff]
        %v1183 = vld [vmem:[%s6 + $0x240] sm:$0xf]
        %v1184 = vld [vmem:[%s6 + $0x244] sm:$0xff]
        %v1185 = vld [vmem:[%s6 + $0x24c] sm:$0xff]
        %v1186 = vld [vmem:[%s6 + $0x254] sm:$0xf]
        %v1187 = vld [vmem:[%s6 + $0x258] sm:$0xff]
        %v1188 = vld [vmem:[%s6 + $0x260] sm:$0xff]
        %v1189 = vld [vmem:[%s6 + $0x268] sm:$0xf]
        %v1190 = vld [vmem:[%s6 + $0x26c] sm:$0xff]
        %v1191 = vld [vmem:[%s6 + $0x274] sm:$0xff]
        %v1192 = vld [vmem:[%s6 + $0x27c] sm:$0xf]
        %v1193 = vld [vmem:[%s7] sm:$0x1f]
        %v1195 = vperm.slane %v1193, 0
        %v1196 = vperm.slane %v1193, 1
        %v1197 = vperm.slane %v1193, 2
        %v1198 = vperm.slane %v1193, 3
        %v1199 = vperm.slane %v1193, 4
        %v1301 = vunpack.c.l.b16 %v1097
        %v1302 = vunpack.c.h.b16 %v1097
        %v1303 = vunpack.c.l.b16 %v1098
        %v1304 = vunpack.c.h.b16 %v1098
        %v1305 = vunpack.c.l.b16 %v1099
        %v1306 = vunpack.c.l.b16 %v1100
        %v1307 = vunpack.c.h.b16 %v1100
        %v1308 = vunpack.c.l.b16 %v1101
        %v1309 = vunpack.c.h.b16 %v1101
        %v1310 = vunpack.c.l.b16 %v1102
        %v1311 = vunpack.c.l.b16 %v1103
        %v1312 = vunpack.c.h.b16 %v1103
        %v1313 = vunpack.c.l.b16 %v1104
        %v1314 = vunpack.c.h.b16 %v1104
        %v1315 = vunpack.c.l.b16 %v1105
        %v1316 = vunpack.c.l.b16 %v1106
        %v1317 = vunpack.c.h.b16 %v1106
        %v1318 = vunpack.c.l.b16 %v1107
        %v1319 = vunpack.c.h.b16 %v1107
        %v1320 = vunpack.c.l.b16 %v1108
        %v1321 = vunpack.c.l.b16 %v1109
        %v1322 = vunpack.c.h.b16 %v1109
        %v1323 = vunpack.c.l.b16 %v1110
        %v1324 = vunpack.c.h.b16 %v1110
        %v1325 = vunpack.c.l.b16 %v1111
        %v1326 = vunpack.c.l.b16 %v1112
        %v1327 = vunpack.c.h.b16 %v1112
        %v1328 = vunpack.c.l.b16 %v1113
        %v1329 = vunpack.c.h.b16 %v1113
        %v1330 = vunpack.c.l.b16 %v1114
        %v1331 = vunpack.c.l.b16 %v1115
        %v1332 = vunpack.c.h.b16 %v1115
        %v1333 = vunpack.c.l.b16 %v1116
        %v1334 = vunpack.c.h.b16 %v1116
        %v1335 = vunpack.c.l.b16 %v1117
        %v1336 = vunpack.c.l.b16 %v1118
        %v1337 = vunpack.c.h.b16 %v1118
        %v1338 = vunpack.c.l.b16 %v1119
        %v1339 = vunpack.c.h.b16 %v1119
        %v1340 = vunpack.c.l.b16 %v1120
        %v1341 = vunpack.c.l.b16 %v1121
        %v1342 = vunpack.c.h.b16 %v1121
        %v1343 = vunpack.c.l.b16 %v1122
        %v1344 = vunpack.c.h.b16 %v1122
        %v1345 = vunpack.c.l.b16 %v1123
        %v1346 = vunpack.c.l.b16 %v1124
        %v1347 = vunpack.c.h.b16 %v1124
        %v1348 = vunpack.c.l.b16 %v1125
        %v1349 = vunpack.c.h.b16 %v1125
        %v1350 = vunpack.c.l.b16 %v1126
        %v1351 = vunpack.c.l.b16 %v1127
        %v1352 = vunpack.c.h.b16 %v1127
        %v1353 = vunpack.c.l.b16 %v1128
        %v1354 = vunpack.c.h.b16 %v1128
        %v1355 = vunpack.c.l.b16 %v1129
        %v1356 = vunpack.c.l.b16 %v1130
        %v1357 = vunpack.c.h.b16 %v1130
        %v1358 = vunpack.c.l.b16 %v1131
        %v1359 = vunpack.c.h.b16 %v1131
        %v1360 = vunpack.c.l.b16 %v1132
        %v1361 = vunpack.c.l.b16 %v1133
        %v1362 = vunpack.c.h.b16 %v1133
        %v1363 = vunpack.c.l.b16 %v1134
        %v1364 = vunpack.c.h.b16 %v1134
        %v1365 = vunpack.c.l.b16 %v1135
        %v1366 = vunpack.c.l.b16 %v1136
        %v1367 = vunpack.c.h.b16 %v1136
        %v1368 = vunpack.c.l.b16 %v1137
        %v1369 = vunpack.c.h.b16 %v1137
        %v1370 = vunpack.c.l.b16 %v1138
        %v1371 = vunpack.c.l.b16 %v1139
        %v1372 = vunpack.c.h.b16 %v1139
        %v1373 = vunpack.c.l.b16 %v1140
        %v1374 = vunpack.c.h.b16 %v1140
        %v1375 = vunpack.c.l.b16 %v1141
        %v1376 = vunpack.c.l.b16 %v1142
        %v1377 = vunpack.c.h.b16 %v1142
        %v1378 = vunpack.c.l.b16 %v1143
        %v1379 = vunpack.c.h.b16 %v1143
        %v1380 = vunpack.c.l.b16 %v1144
        %v1381 = vunpack.c.l.b16 %v1145
        %v1382 = vunpack.c.h.b16 %v1145
        %v1383 = vunpack.c.l.b16 %v1146
        %v1384 = vunpack.c.h.b16 %v1146
        %v1385 = vunpack.c.l.b16 %v1147
        %v1386 = vunpack.c.l.b16 %v1148
        %v1387 = vunpack.c.h.b16 %v1148
        %v1388 = vunpack.c.l.b16 %v1149
        %v1389 = vunpack.c.h.b16 %v1149
        %v1390 = vunpack.c.l.b16 %v1150
        %v1391 = vunpack.c.l.b16 %v1151
        %v1392 = vunpack.c.h.b16 %v1151
        %v1393 = vunpack.c.l.b16 %v1152
        %v1394 = vunpack.c.h.b16 %v1152
        %v1395 = vunpack.c.l.b16 %v1153
        %v1396 = vunpack.c.l.b16 %v1154
        %v1397 = vunpack.c.h.b16 %v1154
        %v1398 = vunpack.c.l.b16 %v1155
        %v1399 = vunpack.c.h.b16 %v1155
        %v1400 = vunpack.c.l.b16 %v1156
        %v1401 = vunpack.c.l.b16 %v1157
        %v1402 = vunpack.c.h.b16 %v1157
        %v1403 = vunpack.c.l.b16 %v1158
        %v1404 = vunpack.c.h.b16 %v1158
        %v1405 = vunpack.c.l.b16 %v1159
        %v1406 = vunpack.c.l.b16 %v1160
        %v1407 = vunpack.c.h.b16 %v1160
        %v1408 = vunpack.c.l.b16 %v1161
        %v1409 = vunpack.c.h.b16 %v1161
        %v1410 = vunpack.c.l.b16 %v1162
        %v1411 = vunpack.c.l.b16 %v1163
        %v1412 = vunpack.c.h.b16 %v1163
        %v1413 = vunpack.c.l.b16 %v1164
        %v1414 = vunpack.c.h.b16 %v1164
        %v1415 = vunpack.c.l.b16 %v1165
        %v1416 = vunpack.c.l.b16 %v1166
        %v1417 = vunpack.c.h.b16 %v1166
        %v1418 = vunpack.c.l.b16 %v1167
        %v1419 = vunpack.c.h.b16 %v1167
        %v1420 = vunpack.c.l.b16 %v1168
        %v1421 = vunpack.c.l.b16 %v1169
        %v1422 = vunpack.c.h.b16 %v1169
        %v1423 = vunpack.c.l.b16 %v1170
        %v1424 = vunpack.c.h.b16 %v1170
        %v1425 = vunpack.c.l.b16 %v1171
        %v1426 = vunpack.c.l.b16 %v1172
        %v1427 = vunpack.c.h.b16 %v1172
        %v1428 = vunpack.c.l.b16 %v1173
        %v1429 = vunpack.c.h.b16 %v1173
        %v1430 = vunpack.c.l.b16 %v1174
        %v1431 = vunpack.c.l.b16 %v1175
        %v1432 = vunpack.c.h.b16 %v1175
        %v1433 = vunpack.c.l.b16 %v1176
        %v1434 = vunpack.c.h.b16 %v1176
        %v1435 = vunpack.c.l.b16 %v1177
        %v1436 = vunpack.c.l.b16 %v1178
        %v1437 = vunpack.c.h.b16 %v1178
        %v1438 = vunpack.c.l.b16 %v1179
        %v1439 = vunpack.c.h.b16 %v1179
        %v1440 = vunpack.c.l.b16 %v1180
        %v1441 = vunpack.c.l.b16 %v1181
        %v1442 = vunpack.c.h.b16 %v1181
        %v1443 = vunpack.c.l.b16 %v1182
        %v1444 = vunpack.c.h.b16 %v1182
        %v1445 = vunpack.c.l.b16 %v1183
        %v1446 = vunpack.c.l.b16 %v1184
        %v1447 = vunpack.c.h.b16 %v1184
        %v1448 = vunpack.c.l.b16 %v1185
        %v1449 = vunpack.c.h.b16 %v1185
        %v1450 = vunpack.c.l.b16 %v1186
        %v1451 = vunpack.c.l.b16 %v1187
        %v1452 = vunpack.c.h.b16 %v1187
        %v1453 = vunpack.c.l.b16 %v1188
        %v1454 = vunpack.c.h.b16 %v1188
        %v1455 = vunpack.c.l.b16 %v1189
        %v1456 = vunpack.c.l.b16 %v1190
        %v1457 = vunpack.c.h.b16 %v1190
        %v1458 = vunpack.c.l.b16 %v1191
        %v1459 = vunpack.c.h.b16 %v1191
        %v1460 = vunpack.c.l.b16 %v1192
        %v1461 = vpack.c.b16 %v1306, %v1301
        %v1462 = vpack.c.b16 %v1307, %v1302
        %v1463 = vpack.c.b16 %v1308, %v1303
        %v1464 = vpack.c.b16 %v1309, %v1304
        %v1465 = vpack.c.b16 %v1310, %v1305
        %v1466 = vpack.c.b16 %v1316, %v1311
        %v1467 = vpack.c.b16 %v1317, %v1312
        %v1468 = vpack.c.b16 %v1318, %v1313
        %v1469 = vpack.c.b16 %v1319, %v1314
        %v1470 = vpack.c.b16 %v1320, %v1315
        %v1471 = vpack.c.b16 %v1326, %v1321
        %v1472 = vpack.c.b16 %v1327, %v1322
        %v1473 = vpack.c.b16 %v1328, %v1323
        %v1474 = vpack.c.b16 %v1329, %v1324
        %v1475 = vpack.c.b16 %v1330, %v1325
        %v1476 = vpack.c.b16 %v1336, %v1331
        %v1477 = vpack.c.b16 %v1337, %v1332
        %v1478 = vpack.c.b16 %v1338, %v1333
        %v1479 = vpack.c.b16 %v1339, %v1334
        %v1480 = vpack.c.b16 %v1340, %v1335
        %v1481 = vpack.c.b16 %v1346, %v1341
        %v1482 = vpack.c.b16 %v1347, %v1342
        %v1483 = vpack.c.b16 %v1348, %v1343
        %v1484 = vpack.c.b16 %v1349, %v1344
        %v1485 = vpack.c.b16 %v1350, %v1345
        %v1486 = vpack.c.b16 %v1356, %v1351
        %v1487 = vpack.c.b16 %v1357, %v1352
        %v1488 = vpack.c.b16 %v1358, %v1353
        %v1489 = vpack.c.b16 %v1359, %v1354
        %v1490 = vpack.c.b16 %v1360, %v1355
        %v1491 = vpack.c.b16 %v1366, %v1361
        %v1492 = vpack.c.b16 %v1367, %v1362
        %v1493 = vpack.c.b16 %v1368, %v1363
        %v1494 = vpack.c.b16 %v1369, %v1364
        %v1495 = vpack.c.b16 %v1370, %v1365
        %v1496 = vpack.c.b16 %v1376, %v1371
        %v1497 = vpack.c.b16 %v1377, %v1372
        %v1498 = vpack.c.b16 %v1378, %v1373
        %v1499 = vpack.c.b16 %v1379, %v1374
        %v1500 = vpack.c.b16 %v1380, %v1375
        %v1501 = vpack.c.b16 %v1386, %v1381
        %v1502 = vpack.c.b16 %v1387, %v1382
        %v1503 = vpack.c.b16 %v1388, %v1383
        %v1504 = vpack.c.b16 %v1389, %v1384
        %v1505 = vpack.c.b16 %v1390, %v1385
        %v1506 = vpack.c.b16 %v1396, %v1391
        %v1507 = vpack.c.b16 %v1397, %v1392
        %v1508 = vpack.c.b16 %v1398, %v1393
        %v1509 = vpack.c.b16 %v1399, %v1394
        %v1510 = vpack.c.b16 %v1400, %v1395
        %v1511 = vpack.c.b16 %v1406, %v1401
        %v1512 = vpack.c.b16 %v1407, %v1402
        %v1513 = vpack.c.b16 %v1408, %v1403
        %v1514 = vpack.c.b16 %v1409, %v1404
        %v1515 = vpack.c.b16 %v1410, %v1405
        %v1516 = vpack.c.b16 %v1416, %v1411
        %v1517 = vpack.c.b16 %v1417, %v1412
        %v1518 = vpack.c.b16 %v1418, %v1413
        %v1519 = vpack.c.b16 %v1419, %v1414
        %v1520 = vpack.c.b16 %v1420, %v1415
        %v1521 = vpack.c.b16 %v1426, %v1421
        %v1522 = vpack.c.b16 %v1427, %v1422
        %v1523 = vpack.c.b16 %v1428, %v1423
        %v1524 = vpack.c.b16 %v1429, %v1424
        %v1525 = vpack.c.b16 %v1430, %v1425
        %v1526 = vpack.c.b16 %v1436, %v1431
        %v1527 = vpack.c.b16 %v1437, %v1432
        %v1528 = vpack.c.b16 %v1438, %v1433
        %v1529 = vpack.c.b16 %v1439, %v1434
        %v1530 = vpack.c.b16 %v1440, %v1435
        %v1531 = vpack.c.b16 %v1446, %v1441
        %v1532 = vpack.c.b16 %v1447, %v1442
        %v1533 = vpack.c.b16 %v1448, %v1443
        %v1534 = vpack.c.b16 %v1449, %v1444
        %v1535 = vpack.c.b16 %v1450, %v1445
        %v1536 = vpack.c.b16 %v1456, %v1451
        %v1537 = vpack.c.b16 %v1457, %v1452
        %v1538 = vpack.c.b16 %v1458, %v1453
        %v1539 = vpack.c.b16 %v1459, %v1454
        %v1540 = vpack.c.b16 %v1460, %v1455
        %1621 = vmatpush.bf16.msra.mxu0 %v1496
        %1622 = vmatpush.bf16.msra.mxu0 %v1491
        %1623 = vmatpush.bf16.msra.mxu0 %v1486
        %1624 = vmatpush.bf16.msra.mxu0 %v1481
        %1625 = vmatpush.bf16.msra.mxu0 %v1476
        %1626 = vmatpush.bf16.msra.mxu0 %v1471
        %1627 = vmatpush.bf16.msra.mxu0 %v1466
        %1628 = vmatpush.bf16.msra.mxu0 %v1461
        %1629 = vmatmul.bf16.gmra.mxu0 %v1089
        %v1630 = vpop.f32.mrf.mxu0
        %v1631 = vadd.f32 %v1195, %v1630
        %v1632 = vpop.f32.mrf.mxu0
        %v1633 = vadd.f32 %v1195, %v1632
        %1634 = vmatmul.bf16.gmra.mxu0 %v1091
        %v1635 = vpop.f32.mrf.mxu0
        %v1636 = vadd.f32 %v1195, %v1635
        %v1637 = vpop.f32.mrf.mxu0
        %v1638 = vadd.f32 %v1195, %v1637
        %1639 = vmatmul.bf16.gmra.mxu0 %v1093
        %v1640 = vpop.f32.mrf.mxu0
        %v1641 = vadd.f32 %v1195, %v1640
        %v1642 = vpop.f32.mrf.mxu0
        %v1643 = vadd.f32 %v1195, %v1642
        %1644 = vmatmul.bf16.gmra.mxu0 %v1095
        %v1645 = vpop.f32.mrf.mxu0
        %v1646 = vadd.f32 %v1195, %v1645
        %v1647 = vpop.f32.mrf.mxu0
        %v1648 = vadd.f32 %v1195, %v1647
        %1649 = vdwg.mxu0
        %1650 = vmatpush.bf16.msra.mxu0 %v1536
        %1651 = vmatpush.bf16.msra.mxu0 %v1531
        %1652 = vmatpush.bf16.msra.mxu0 %v1526
        %1653 = vmatpush.bf16.msra.mxu0 %v1521
        %1654 = vmatpush.bf16.msra.mxu0 %v1516
        %1655 = vmatpush.bf16.msra.mxu0 %v1511
        %1656 = vmatpush.bf16.msra.mxu0 %v1506
        %1657 = vmatpush.bf16.msra.mxu0 %v1501
        %1658 = vmatmul.bf16.gmra.mxu0 %v1090
        %v1659 = vpop.f32.mrf.mxu0
        %v1660 = vadd.f32 %v1631, %v1659
        %v1661 = vpop.f32.mrf.mxu0
        %v1662 = vadd.f32 %v1633, %v1661
        %1663 = vmatmul.bf16.gmra.mxu0 %v1092
        %v1664 = vpop.f32.mrf.mxu0
        %v1665 = vadd.f32 %v1636, %v1664
        %v1666 = vpop.f32.mrf.mxu0
        %v1667 = vadd.f32 %v1638, %v1666
        %1668 = vmatmul.bf16.gmra.mxu0 %v1094
        %v1669 = vpop.f32.mrf.mxu0
        %v1670 = vadd.f32 %v1641, %v1669
        %v1671 = vpop.f32.mrf.mxu0
        %v1672 = vadd.f32 %v1643, %v1671
        %1673 = vmatmul.bf16.gmra.mxu0 %v1096
        %v1674 = vpop.f32.mrf.mxu0
        %v1675 = vadd.f32 %v1646, %v1674
        %v1676 = vpop.f32.mrf.mxu0
        %v1677 = vadd.f32 %v1648, %v1676
        %1678 = vdwg.mxu0
        %1679 = vmatpush.bf16.msra.mxu0 %v1497
        %1680 = vmatpush.bf16.msra.mxu0 %v1492
        %1681 = vmatpush.bf16.msra.mxu0 %v1487
        %1682 = vmatpush.bf16.msra.mxu0 %v1482
        %1683 = vmatpush.bf16.msra.mxu0 %v1477
        %1684 = vmatpush.bf16.msra.mxu0 %v1472
        %1685 = vmatpush.bf16.msra.mxu0 %v1467
        %1686 = vmatpush.bf16.msra.mxu0 %v1462
        %1687 = vmatmul.bf16.gmra.mxu0 %v1089
        %v1688 = vpop.f32.mrf.mxu0
        %v1689 = vadd.f32 %v1196, %v1688
        %v1690 = vpop.f32.mrf.mxu0
        %v1691 = vadd.f32 %v1196, %v1690
        %1692 = vmatmul.bf16.gmra.mxu0 %v1091
        %v1693 = vpop.f32.mrf.mxu0
        %v1694 = vadd.f32 %v1196, %v1693
        %v1695 = vpop.f32.mrf.mxu0
        %v1696 = vadd.f32 %v1196, %v1695
        %1697 = vmatmul.bf16.gmra.mxu0 %v1093
        %v1698 = vpop.f32.mrf.mxu0
        %v1699 = vadd.f32 %v1196, %v1698
        %v1700 = vpop.f32.mrf.mxu0
        %v1701 = vadd.f32 %v1196, %v1700
        %1702 = vmatmul.bf16.gmra.mxu0 %v1095
        %v1703 = vpop.f32.mrf.mxu0
        %v1704 = vadd.f32 %v1196, %v1703
        %v1705 = vpop.f32.mrf.mxu0
        %v1706 = vadd.f32 %v1196, %v1705
        %1707 = vdwg.mxu0
        %1708 = vmatpush.bf16.msra.mxu0 %v1537
        %1709 = vmatpush.bf16.msra.mxu0 %v1532
        %1710 = vmatpush.bf16.msra.mxu0 %v1527
        %1711 = vmatpush.bf16.msra.mxu0 %v1522
        %1712 = vmatpush.bf16.msra.mxu0 %v1517
        %1713 = vmatpush.bf16.msra.mxu0 %v1512
        %1714 = vmatpush.bf16.msra.mxu0 %v1507
        %1715 = vmatpush.bf16.msra.mxu0 %v1502
        %1716 = vmatmul.bf16.gmra.mxu0 %v1090
        %v1717 = vpop.f32.mrf.mxu0
        %v1718 = vadd.f32 %v1689, %v1717
        %v1719 = vpop.f32.mrf.mxu0
        %v1720 = vadd.f32 %v1691, %v1719
        %1721 = vmatmul.bf16.gmra.mxu0 %v1092
        %v1722 = vpop.f32.mrf.mxu0
        %v1723 = vadd.f32 %v1694, %v1722
        %v1724 = vpop.f32.mrf.mxu0
        %v1725 = vadd.f32 %v1696, %v1724
        %1726 = vmatmul.bf16.gmra.mxu0 %v1094
        %v1727 = vpop.f32.mrf.mxu0
        %v1728 = vadd.f32 %v1699, %v1727
        %v1729 = vpop.f32.mrf.mxu0
        %v1730 = vadd.f32 %v1701, %v1729
        %1731 = vmatmul.bf16.gmra.mxu0 %v1096
        %v1732 = vpop.f32.mrf.mxu0
        %v1733 = vadd.f32 %v1704, %v1732
        %v1734 = vpop.f32.mrf.mxu0
        %v1735 = vadd.f32 %v1706, %v1734
        %1736 = vdwg.mxu0
        %1737 = vmatpush.bf16.msra.mxu0 %v1498
        %1738 = vmatpush.bf16.msra.mxu0 %v1493
        %1739 = vmatpush.bf16.msra.mxu0 %v1488
        %1740 = vmatpush.bf16.msra.mxu0 %v1483
        %1741 = vmatpush.bf16.msra.mxu0 %v1478
        %1742 = vmatpush.bf16.msra.mxu0 %v1473
        %1743 = vmatpush.bf16.msra.mxu0 %v1468
        %1744 = vmatpush.bf16.msra.mxu0 %v1463
        %1745 = vmatmul.bf16.gmra.mxu0 %v1089
        %v1746 = vpop.f32.mrf.mxu0
        %v1747 = vadd.f32 %v1197, %v1746
        %v1748 = vpop.f32.mrf.mxu0
        %v1749 = vadd.f32 %v1197, %v1748
        %1750 = vmatmul.bf16.gmra.mxu0 %v1091
        %v1751 = vpop.f32.mrf.mxu0
        %v1752 = vadd.f32 %v1197, %v1751
        %v1753 = vpop.f32.mrf.mxu0
        %v1754 = vadd.f32 %v1197, %v1753
        %1755 = vmatmul.bf16.gmra.mxu0 %v1093
        %v1756 = vpop.f32.mrf.mxu0
        %v1757 = vadd.f32 %v1197, %v1756
        %v1758 = vpop.f32.mrf.mxu0
        %v1759 = vadd.f32 %v1197, %v1758
        %1760 = vmatmul.bf16.gmra.mxu0 %v1095
        %v1761 = vpop.f32.mrf.mxu0
        %v1762 = vadd.f32 %v1197, %v1761
        %v1763 = vpop.f32.mrf.mxu0
        %v1764 = vadd.f32 %v1197, %v1763
        %1765 = vdwg.mxu0
        %1766 = vmatpush.bf16.msra.mxu0 %v1538
        %1767 = vmatpush.bf16.msra.mxu0 %v1533
        %1768 = vmatpush.bf16.msra.mxu0 %v1528
        %1769 = vmatpush.bf16.msra.mxu0 %v1523
        %1770 = vmatpush.bf16.msra.mxu0 %v1518
        %1771 = vmatpush.bf16.msra.mxu0 %v1513
        %1772 = vmatpush.bf16.msra.mxu0 %v1508
        %1773 = vmatpush.bf16.msra.mxu0 %v1503
        %1774 = vmatmul.bf16.gmra.mxu0 %v1090
        %v1775 = vpop.f32.mrf.mxu0
        %v1776 = vadd.f32 %v1747, %v1775
        %v1777 = vpop.f32.mrf.mxu0
        %v1778 = vadd.f32 %v1749, %v1777
        %1779 = vmatmul.bf16.gmra.mxu0 %v1092
        %v1780 = vpop.f32.mrf.mxu0
        %v1781 = vadd.f32 %v1752, %v1780
        %v1782 = vpop.f32.mrf.mxu0
        %v1783 = vadd.f32 %v1754, %v1782
        %1784 = vmatmul.bf16.gmra.mxu0 %v1094
        %v1785 = vpop.f32.mrf.mxu0
        %v1786 = vadd.f32 %v1757, %v1785
        %v1787 = vpop.f32.mrf.mxu0
        %v1788 = vadd.f32 %v1759, %v1787
        %1789 = vmatmul.bf16.gmra.mxu0 %v1096
        %v1790 = vpop.f32.mrf.mxu0
        %v1791 = vadd.f32 %v1762, %v1790
        %v1792 = vpop.f32.mrf.mxu0
        %v1793 = vadd.f32 %v1764, %v1792
        %1794 = vdwg.mxu0
        %1795 = vmatpush.bf16.msra.mxu0 %v1499
        %1796 = vmatpush.bf16.msra.mxu0 %v1494
        %1797 = vmatpush.bf16.msra.mxu0 %v1489
        %1798 = vmatpush.bf16.msra.mxu0 %v1484
        %1799 = vmatpush.bf16.msra.mxu0 %v1479
        %1800 = vmatpush.bf16.msra.mxu0 %v1474
        %1801 = vmatpush.bf16.msra.mxu0 %v1469
        %1802 = vmatpush.bf16.msra.mxu0 %v1464
        %1803 = vmatmul.bf16.gmra.mxu0 %v1089
        %v1804 = vpop.f32.mrf.mxu0
        %v1805 = vadd.f32 %v1198, %v1804
        %v1806 = vpop.f32.mrf.mxu0
        %v1807 = vadd.f32 %v1198, %v1806
        %1808 = vmatmul.bf16.gmra.mxu0 %v1091
        %v1809 = vpop.f32.mrf.mxu0
        %v1810 = vadd.f32 %v1198, %v1809
        %v1811 = vpop.f32.mrf.mxu0
        %v1812 = vadd.f32 %v1198, %v1811
        %1813 = vmatmul.bf16.gmra.mxu0 %v1093
        %v1814 = vpop.f32.mrf.mxu0
        %v1815 = vadd.f32 %v1198, %v1814
        %v1816 = vpop.f32.mrf.mxu0
        %v1817 = vadd.f32 %v1198, %v1816
        %1818 = vmatmul.bf16.gmra.mxu0 %v1095
        %v1819 = vpop.f32.mrf.mxu0
        %v1820 = vadd.f32 %v1198, %v1819
        %v1821 = vpop.f32.mrf.mxu0
        %v1822 = vadd.f32 %v1198, %v1821
        %1823 = vdwg.mxu0
        %1824 = vmatpush.bf16.msra.mxu0 %v1539
        %1825 = vmatpush.bf16.msra.mxu0 %v1534
        %1826 = vmatpush.bf16.msra.mxu0 %v1529
        %1827 = vmatpush.bf16.msra.mxu0 %v1524
        %1828 = vmatpush.bf16.msra.mxu0 %v1519
        %1829 = vmatpush.bf16.msra.mxu0 %v1514
        %1830 = vmatpush.bf16.msra.mxu0 %v1509
        %1831 = vmatpush.bf16.msra.mxu0 %v1504
        %1832 = vmatmul.bf16.gmra.mxu0 %v1090
        %v1833 = vpop.f32.mrf.mxu0
        %v1834 = vadd.f32 %v1805, %v1833
        %v1835 = vpop.f32.mrf.mxu0
        %v1836 = vadd.f32 %v1807, %v1835
        %1837 = vmatmul.bf16.gmra.mxu0 %v1092
        %v1838 = vpop.f32.mrf.mxu0
        %v1839 = vadd.f32 %v1810, %v1838
        %v1840 = vpop.f32.mrf.mxu0
        %v1841 = vadd.f32 %v1812, %v1840
        %1842 = vmatmul.bf16.gmra.mxu0 %v1094
        %v1843 = vpop.f32.mrf.mxu0
        %v1844 = vadd.f32 %v1815, %v1843
        %v1845 = vpop.f32.mrf.mxu0
        %v1846 = vadd.f32 %v1817, %v1845
        %1847 = vmatmul.bf16.gmra.mxu0 %v1096
        %v1848 = vpop.f32.mrf.mxu0
        %v1849 = vadd.f32 %v1820, %v1848
        %v1850 = vpop.f32.mrf.mxu0
        %v1851 = vadd.f32 %v1822, %v1850
        %1852 = vdwg.mxu0
        %1853 = vmatpush.bf16.msra.mxu0 %v1500
        %1854 = vmatpush.bf16.msra.mxu0 %v1495
        %1855 = vmatpush.bf16.msra.mxu0 %v1490
        %1856 = vmatpush.bf16.msra.mxu0 %v1485
        %1857 = vmatpush.bf16.msra.mxu0 %v1480
        %1858 = vmatpush.bf16.msra.mxu0 %v1475
        %1859 = vmatpush.bf16.msra.mxu0 %v1470
        %1860 = vmatpush.bf16.msra.mxu0 %v1465
        %1861 = vmatmul.bf16.gmra.mxu0 %v1089
        %v1862 = vpop.f32.mrf.mxu0
        %v1863 = vadd.f32 %v1199, %v1862
        %v1864 = vpop.f32.mrf.mxu0
        %v1865 = vadd.f32 %v1199, %v1864
        %1866 = vmatmul.bf16.gmra.mxu0 %v1091
        %v1867 = vpop.f32.mrf.mxu0
        %v1868 = vadd.f32 %v1199, %v1867
        %v1869 = vpop.f32.mrf.mxu0
        %v1870 = vadd.f32 %v1199, %v1869
        %1871 = vmatmul.bf16.gmra.mxu0 %v1093
        %v1872 = vpop.f32.mrf.mxu0
        %v1873 = vadd.f32 %v1199, %v1872
        %v1874 = vpop.f32.mrf.mxu0
        %v1875 = vadd.f32 %v1199, %v1874
        %1876 = vmatmul.bf16.gmra.mxu0 %v1095
        %v1877 = vpop.f32.mrf.mxu0
        %v1878 = vadd.f32 %v1199, %v1877
        %v1879 = vpop.f32.mrf.mxu0
        %v1880 = vadd.f32 %v1199, %v1879
        %1881 = vdwg.mxu0
        %1882 = vmatpush.bf16.msra.mxu0 %v1540
        %1883 = vmatpush.bf16.msra.mxu0 %v1535
        %1884 = vmatpush.bf16.msra.mxu0 %v1530
        %1885 = vmatpush.bf16.msra.mxu0 %v1525
        %1886 = vmatpush.bf16.msra.mxu0 %v1520
        %1887 = vmatpush.bf16.msra.mxu0 %v1515
        %1888 = vmatpush.bf16.msra.mxu0 %v1510
        %1889 = vmatpush.bf16.msra.mxu0 %v1505
        %1890 = vmatmul.bf16.gmra.mxu0 %v1090
        %v1891 = vpop.f32.mrf.mxu0
        %v1892 = vadd.f32 %v1863, %v1891
        %v1893 = vpop.f32.mrf.mxu0
        %v1894 = vadd.f32 %v1865, %v1893
        %1895 = vmatmul.bf16.gmra.mxu0 %v1092
        %v1896 = vpop.f32.mrf.mxu0
        %v1897 = vadd.f32 %v1868, %v1896
        %v1898 = vpop.f32.mrf.mxu0
        %v1899 = vadd.f32 %v1870, %v1898
        %1900 = vmatmul.bf16.gmra.mxu0 %v1094
        %v1901 = vpop.f32.mrf.mxu0
        %v1902 = vadd.f32 %v1873, %v1901
        %v1903 = vpop.f32.mrf.mxu0
        %v1904 = vadd.f32 %v1875, %v1903
        %1905 = vmatmul.bf16.gmra.mxu0 %v1096
        %v1906 = vpop.f32.mrf.mxu0
        %v1907 = vadd.f32 %v1878, %v1906
        %v1908 = vpop.f32.mrf.mxu0
        %v1909 = vadd.f32 %v1880, %v1908
        %1910 = vdwg.mxu0
        %v1911 = vunpack.c.l.bf16 %v373
        %v1912 = vunpack.c.h.bf16 %v373
        %v1913 = vunpack.c.l.bf16 %v374
        %v1914 = vunpack.c.h.bf16 %v374
        %v1915 = vunpack.c.l.bf16 %v375
        %v1916 = vunpack.c.h.bf16 %v375
        %v1917 = vunpack.c.l.bf16 %v376
        %v1918 = vunpack.c.h.bf16 %v376
        %v1919 = vunpack.c.l.bf16 %v377
        %v1920 = vunpack.c.h.bf16 %v377
        %v1921 = vunpack.c.l.bf16 %v378
        %v1922 = vunpack.c.h.bf16 %v378
        %v1923 = vunpack.c.l.bf16 %v379
        %v1924 = vunpack.c.h.bf16 %v379
        %v1925 = vunpack.c.l.bf16 %v380
        %v1926 = vunpack.c.h.bf16 %v380
        %v1927 = vadd.f32 %v1911, %v1660
        %v1928 = vadd.f32 %v1912, %v1718
        %v1929 = vadd.f32 %v1913, %v1662
        %v1930 = vadd.f32 %v1914, %v1720
        %v1931 = vadd.f32 %v1915, %v1665
        %v1932 = vadd.f32 %v1916, %v1723
        %v1933 = vadd.f32 %v1917, %v1667
        %v1934 = vadd.f32 %v1918, %v1725
        %v1935 = vadd.f32 %v1919, %v1670
        %v1936 = vadd.f32 %v1920, %v1728
        %v1937 = vadd.f32 %v1921, %v1672
        %v1938 = vadd.f32 %v1922, %v1730
        %v1939 = vadd.f32 %v1923, %v1675
        %v1940 = vadd.f32 %v1924, %v1733
        %v1941 = vadd.f32 %v1925, %v1677
        %v1942 = vadd.f32 %v1926, %v1735
        %v1943 = vpack.c.bf16 %v1928, %v1927
        %v1944 = vpack.c.bf16 %v1930, %v1929
        %v1945 = vpack.c.bf16 %v1932, %v1931
        %v1946 = vpack.c.bf16 %v1934, %v1933
        %v1947 = vpack.c.bf16 %v1936, %v1935
        %v1948 = vpack.c.bf16 %v1938, %v1937
        %v1949 = vpack.c.bf16 %v1940, %v1939
        %v1950 = vpack.c.bf16 %v1942, %v1941
        %1951 = vst [vmem:[%s352] sm:$0xff] %v1943
        %1952 = vst [vmem:[%s352 + $0x10] sm:$0xff] %v1944
        %1953 = vst [vmem:[%s352 + $0x20] sm:$0xff] %v1945
        %1954 = vst [vmem:[%s352 + $0x30] sm:$0xff] %v1946
        %1955 = vst [vmem:[%s352 + $0x40] sm:$0xff] %v1947
        %1956 = vst [vmem:[%s352 + $0x50] sm:$0xff] %v1948
        %1957 = vst [vmem:[%s352 + $0x60] sm:$0xff] %v1949
        %1958 = vst [vmem:[%s352 + $0x70] sm:$0xff] %v1950
        %v1959 = vadd.f32 %v1911, %v1776
        %v1960 = vadd.f32 %v1912, %v1834
        %v1961 = vadd.f32 %v1913, %v1778
        %v1962 = vadd.f32 %v1914, %v1836
        %v1963 = vadd.f32 %v1915, %v1781
        %v1964 = vadd.f32 %v1916, %v1839
        %v1965 = vadd.f32 %v1917, %v1783
        %v1966 = vadd.f32 %v1918, %v1841
        %v1967 = vadd.f32 %v1919, %v1786
        %v1968 = vadd.f32 %v1920, %v1844
        %v1969 = vadd.f32 %v1921, %v1788
        %v1970 = vadd.f32 %v1922, %v1846
        %v1971 = vadd.f32 %v1923, %v1791
        %v1972 = vadd.f32 %v1924, %v1849
        %v1973 = vadd.f32 %v1925, %v1793
        %v1974 = vadd.f32 %v1926, %v1851
        %v1975 = vpack.c.bf16 %v1960, %v1959
        %v1976 = vpack.c.bf16 %v1962, %v1961
        %v1977 = vpack.c.bf16 %v1964, %v1963
        %v1978 = vpack.c.bf16 %v1966, %v1965
        %v1979 = vpack.c.bf16 %v1968, %v1967
        %v1980 = vpack.c.bf16 %v1970, %v1969
        %v1981 = vpack.c.bf16 %v1972, %v1971
        %v1982 = vpack.c.bf16 %v1974, %v1973
        %1983 = vst [vmem:[%s352 + $0x8] sm:$0xff] %v1975
        %1984 = vst [vmem:[%s352 + $0x18] sm:$0xff] %v1976
        %1985 = vst [vmem:[%s352 + $0x28] sm:$0xff] %v1977
        %1986 = vst [vmem:[%s352 + $0x38] sm:$0xff] %v1978
        %1987 = vst [vmem:[%s352 + $0x48] sm:$0xff] %v1979
        %1988 = vst [vmem:[%s352 + $0x58] sm:$0xff] %v1980
        %1989 = vst [vmem:[%s352 + $0x68] sm:$0xff] %v1981
        %1990 = vst [vmem:[%s352 + $0x78] sm:$0xff] %v1982
        %v1991 = vld [vmem:[%s364] sm:$0xff]
        %v1992 = vld [vmem:[%s364 + $0x8] sm:$0xff]
        %v1993 = vld [vmem:[%s364 + $0x10] sm:$0xff]
        %v1994 = vld [vmem:[%s364 + $0x18] sm:$0xff]
        %v1995 = vld [vmem:[%s364 + $0x20] sm:$0xff]
        %v1996 = vld [vmem:[%s364 + $0x28] sm:$0xff]
        %v1997 = vld [vmem:[%s364 + $0x30] sm:$0xff]
        %v1998 = vld [vmem:[%s364 + $0x38] sm:$0xff]
        %2007 = vrot.lane.b32.xlu0 %v1991, 3
        %v2008 = vpop.permute.xlu0 %2007
        %2009 = vrot.lane.b32.xlu0 %v1992, 3
        %v2010 = vpop.permute.xlu0 %2009
        %2011 = vrot.lane.b32.xlu0 %v1993, 3
        %v2012 = vpop.permute.xlu0 %2011
        %2013 = vrot.lane.b32.xlu0 %v1994, 3
        %v2014 = vpop.permute.xlu0 %2013
        %2015 = vrot.lane.b32.xlu0 %v1995, 3
        %v2016 = vpop.permute.xlu0 %2015
        %2017 = vrot.lane.b32.xlu0 %v1996, 3
        %v2018 = vpop.permute.xlu0 %2017
        %2019 = vrot.lane.b32.xlu0 %v1997, 3
        %v2020 = vpop.permute.xlu0 %2019
        %2021 = vrot.lane.b32.xlu0 %v1998, 3
        %v2022 = vpop.permute.xlu0 %2021
        %vm2031 = vcmask 23552
        %v2032 = vsel %vm2031, %v1991, %v2008
        %v2033 = vsel %vm2031, %v1992, %v2010
        %v2034 = vsel %vm2031, %v1993, %v2012
        %v2035 = vsel %vm2031, %v1994, %v2014
        %v2036 = vsel %vm2031, %v1995, %v2016
        %v2037 = vsel %vm2031, %v1996, %v2018
        %v2038 = vsel %vm2031, %v1997, %v2020
        %v2039 = vsel %vm2031, %v1998, %v2022
        %v2040 = vadd.f32 %v2032, %v1892
        %v2041 = vadd.f32 %v2033, %v1894
        %v2042 = vadd.f32 %v2034, %v1897
        %v2043 = vadd.f32 %v2035, %v1899
        %v2044 = vadd.f32 %v2036, %v1902
        %v2045 = vadd.f32 %v2037, %v1904
        %v2046 = vadd.f32 %v2038, %v1907
        %v2047 = vadd.f32 %v2039, %v1909
        %vm2048 = vcmask 48128
        %2049 = vst.msk [vmem:[%s370] sm:$0xff] %vm2048, %v2040
        %2050 = vst.msk [vmem:[%s370 + $0x8] sm:$0xff] %vm2048, %v2041
        %2051 = vst.msk [vmem:[%s370 + $0x10] sm:$0xff] %vm2048, %v2042
        %2052 = vst.msk [vmem:[%s370 + $0x18] sm:$0xff] %vm2048, %v2043
        %2053 = vst.msk [vmem:[%s370 + $0x20] sm:$0xff] %vm2048, %v2044
        %2054 = vst.msk [vmem:[%s370 + $0x28] sm:$0xff] %vm2048, %v2045
        %2055 = vst.msk [vmem:[%s370 + $0x30] sm:$0xff] %vm2048, %v2046
        %2056 = vst.msk [vmem:[%s370 + $0x38] sm:$0xff] %vm2048, %v2047
        %s2057 = smul.u32 8, %s24
        %p2058 = scmp.lt.s32.totalorder %s2057, 15
        %s2059 = scalar_select %p2058, %s2057, 15
        %s2060 = smul.addr %s2059, 8
        %s2061 = scalar_lea.vmem %s8, %s2060
        %s2062 = sand.u32 %s236, 1
        %s2063 = scalar_lea.sflag [#allocation3], %s2062
        %s2064 = sand.u32 %s236, 1
        %s2065 = smul.addr %s2064, 128
        %s2066 = scalar_lea.vmem [#allocation2], %s2065
        // Predicated region
        $region53: #{tpu_custom_call.1} parent=51 // pred_check
          %p2067 = pneg %p220
        $region54: #{tpu_custom_call.1} parent=51 // pred_check_branch
          %2069 = sbr.rel (%p2067) target = $region56
        $region55: #{tpu_custom_call.1} parent=51 // pred_region
          %s2070 = smul.u32 8, %s24
        $region56: #{tpu_custom_call.1} parent=51 // pred_fallthru
          _
        // Predicated region
        $region57: #{tpu_custom_call.1} parent=51 // pred_check
          %p2071 = pneg %p246
        $region58: #{tpu_custom_call.1} parent=51 // pred_check_branch
          %2073 = sbr.rel (%p2071) target = $region60
        $region59: #{tpu_custom_call.1} parent=51 // pred_region
          %s2074 = smul.u32 8, %s24
          %2076 = vsyncadd %s2063, 0
          %s2077 = smul.addr %s2074, 4
          %s2078 = smul.addr %s2077, 4
          %s2079 = scalar_lea.hbm %s9, %s2078
          %s2080 = sshll.u32 %s2066, 4
          %s2081 = int_to_ptr.vmem [resolvable:$true] %s2080
          %s2082 = sshll.u32 %s2079, 4
          %s2083 = int_to_ptr.hbm [resolvable:$true] %s2082
          %2088 = dma.vmem_to_hbm [thread:$0]  %s2081, 2048, %s2083, %s2063, 256, 256, 16
        $region60: #{tpu_custom_call.1} parent=51 // pred_fallthru
          _
      $region52: #{tpu_custom_call.1} parent=5 // pred_fallthru
        _
      %p2089 = scmp.le.s32.totalorder 2, %s19
      // Predicated region
      $region61: #{tpu_custom_call.1} parent=5 // pred_check
        %p2090 = pneg %p2089
      $region62: #{tpu_custom_call.1} parent=5 // pred_check_branch
        %2092 = sbr.rel (%p2090) target = $region64
      $region63: #{tpu_custom_call.1} parent=5 // pred_region
        %s2093 = ssub.s32 %s19, 2
        // Predicated region
        $region65: #{tpu_custom_call.1} parent=63 // pred_check
          %p2094 = pneg %p226
        $region66: #{tpu_custom_call.1} parent=63 // pred_check_branch
          %2096 = sbr.rel (%p2094) target = $region68
        $region67: #{tpu_custom_call.1} parent=63 // pred_region
          %s2097 = smul.u32 8, %s25
          %p2098 = scmp.lt.s32.totalorder %s2097, 15
          %s2099 = scalar_select %p2098, %s2097, 15
          %s2100 = smul.addr %s2099, 8
          %s2101 = scalar_lea.vmem %s8, %s2100
        $region68: #{tpu_custom_call.1} parent=63 // pred_fallthru
          _
        // Predicated region
        $region69: #{tpu_custom_call.1} parent=63 // pred_check
          %p2102 = pneg %p252
        $region70: #{tpu_custom_call.1} parent=63 // pred_check_branch
          %2104 = sbr.rel (%p2102) target = $region72
        $region71: #{tpu_custom_call.1} parent=63 // pred_region
          %s2105 = sand.u32 %s237, 1
          %s2106 = scalar_lea.sflag [#allocation3], %s2105
          %s2107 = sand.u32 %s237, 1
          %s2108 = smul.addr %s2107, 128
          %s2109 = scalar_lea.vmem [#allocation2], %s2108
          %2111 = dma.done %s2106, 2048
        $region72: #{tpu_custom_call.1} parent=63 // pred_fallthru
          _
      $region64: #{tpu_custom_call.1} parent=5 // pred_fallthru
        _
    $region6: #{tpu_custom_call.1} parent=1 // loop_footer
      %s23 = sadd.s32 1, %s19
    $region7: #{tpu_custom_call.1} parent=1 // loop_footer_branch
      %18 = sbr.rel target = $region3
    $region8: #{tpu_custom_call.1} parent=1 // loop_exit
      _
    %2112 = vsyncpa [#allocation3], 1
    %s2113 = scalar_lea.sflag [#allocation3], 1
    %2114 = vsyncpa %s2113, 1

</llo_original>
